<compile_context>
chip_gen: v5e
topology: v5e:2x2
jax: 0.10.0
libtpu: 0.0.40
codegen_flags: <defaults>
</compile_context>

<pallas_src>
import jax
import jax.numpy as jnp
from jax.experimental import pallas as pl
from jax.experimental.pallas import tpu as pltpu

PACK_W = 128  # lane-dense packed (gates, indices) output width


def _round_up(x, m):
    return (x + m - 1) // m * m


def _vmem_capacity_bytes():
    # v5e/v6e have 128 MiB VMEM per TensorCore, v7x only 64 MiB; ask the
    # runtime instead of assuming.
    try:
        info = pltpu.get_tpu_info()
        cap = getattr(info, "vmem_capacity_bytes", None)
        if cap:
            return int(cap)
    except Exception:
        pass
    return 64 * 2**20  # conservative (v7x per-TC)


def _gating_kernel(top_k, num_experts, ep, num_tokens, pack_w):
    K, E, EP = top_k, num_experts, ep

    def kernel(x_ref, w_ref, logits_ref, packed_ref, count_ref):
        i = pl.program_id(0)
        tm = x_ref.shape[0]

        # logits = x @ W^T with f32 accumulation (reference does .float()).
        logits = jnp.dot(x_ref[...], w_ref[...],
                         preferred_element_type=jnp.float32)        # (tm, EP)
        # Write at native E width (no padded writeback, no wrapper slice).
        logits_ref[...] = logits if EP == E else logits[:, :E]

        lane = jax.lax.broadcasted_iota(jnp.int32, (tm, EP), 1)
        row = jax.lax.broadcasted_iota(jnp.int32, (tm, 1), 0)
        valid_row = (i * tm + row) < num_tokens                      # (tm, 1)

        # Padded expert lanes must never be selected.
        work = logits if EP == E else jnp.where(lane < E, logits, -jnp.inf)

        # Iterative exact top-k: max, smallest-index tie-break, mask, repeat.
        sel_acc = jnp.zeros((tm, EP), jnp.int32)
        vals, idxs = [], []
        for _ in range(K):
            m = jnp.max(work, axis=-1, keepdims=True)                # (tm, 1)
            idx = jnp.min(jnp.where(work == m, lane, EP),
                          axis=-1, keepdims=True)                    # (tm, 1)
            sel = lane == idx                                        # (tm, EP)
            sel_acc = sel_acc + sel.astype(jnp.int32)                # disjoint
            work = jnp.where(sel, -jnp.inf, work)
            vals.append(m)
            idxs.append(idx)

        # Single fused per-block expert count (summed across blocks outside).
        count = jnp.sum(jnp.where(valid_row, sel_acc, 0),
                        axis=0, keepdims=True)                       # (1, EP)
        count_ref[...] = count.reshape(1, 1, EP)

        # Softmax over the K selected logits.  vals[0] is the row max, so no
        # extra reduce; everything stays as (tm, 1) columns.  Exact divide.
        mx = vals[0]
        exps = [jnp.exp(v - mx) for v in vals]
        denom = exps[0]
        for e in exps[1:]:
            denom = denom + e
        inv = 1.0 / denom

        # Lane-dense packed output: lanes [0,K) gates, lanes [K,2K) indices.
        lane_p = lane if EP == pack_w else \
            jax.lax.broadcasted_iota(jnp.int32, (tm, pack_w), 1)
        packed = jnp.zeros((tm, pack_w), jnp.float32)
        for k in range(K):
            packed = jnp.where(lane_p == k, exps[k] * inv, packed)
            packed = jnp.where(lane_p == (K + k),
                               idxs[k].astype(jnp.float32), packed)
        packed_ref[...] = packed.astype(packed_ref.dtype)

    return kernel


def granitemoe_topk_gating(hidden_states, weight, top_k, *, tm=512):
    """
    hidden_states: [T, input_size]
    weight:        [num_experts, input_size]  (nn.Linear weight, no bias)

    Returns (index_sorted_experts, batch_index, batch_gates, expert_size,
    logits), mirroring GraniteMoeTopKGating.forward (expert_size is returned
    as an int32 array instead of a Python list).
    """
    T, H = hidden_states.shape
    E, H2 = weight.shape
    assert H == H2
    assert 1 <= top_k <= E
    K = top_k
    assert 2 * K <= PACK_W

    dtype = hidden_states.dtype
    itemsize = jnp.dtype(dtype).itemsize
    sub = max(8, 32 // itemsize)             # min sublane tile: 8 f32 / 16 bf16

    # Lane-padded expert width for the matmul / top-k working set.  Use a
    # 256 multiple when E > 128 so the 2x256^2 MXU (v6e/v7x) is not half-empty.
    EP = 128 if E <= 128 else _round_up(E, 256)

    # Packed (gates, indices) dtype: activation dtype when it represents the
    # expert indices exactly (bf16 holds ints <= 256); f32 otherwise.  Gates
    # are cast to the activation dtype by the reference anyway.
    if dtype == jnp.float32 or E > 256:
        pack_dtype = jnp.float32
    else:
        pack_dtype = dtype
    pack_itemsize = jnp.dtype(pack_dtype).itemsize

    # --- generation-aware token tile sizing ---------------------------------
    vmem_budget = int(_vmem_capacity_bytes() * 0.85)

    def tile_bytes(tm_, w_bufs):
        return (2 * tm_ * H * itemsize                 # x (double-buffered)
                + w_bufs * H * EP * itemsize           # router weight
                + 2 * tm_ * E * 4                      # f32 logits out
                + 2 * tm_ * PACK_W * pack_itemsize     # packed out
                + 2 * EP * 4                           # partial counts
                + 3 * tm_ * EP * 4)                    # in-kernel f32 live tiles

    # Keep >= 2 blocks when possible so both v7x TensorCores get work.
    tm = max(sub, min(tm, _round_up(pl.cdiv(T, 2), sub)))
    tm = _round_up(tm, sub)
    while tm > sub and tile_bytes(tm, 2) > vmem_budget:
        tm = _round_up(max(sub, tm // 2), sub)
    nblk = pl.cdiv(T, tm)
    vmem_limit = int(min(vmem_budget, max(32 * 2**20, 2 * tile_bytes(tm, 2))))

    # Router weight in the activation dtype (nn.Linear runs in model dtype;
    # only the logits output is promoted to f32), lane-padded to EP.  Small,
    # one-time pass (unlike padding the activations).
    w_t = weight.astype(dtype).T                         # [H, E]
    if EP != E:
        w_t = jnp.pad(w_t, ((0, 0), (0, EP - E)))        # [H, EP]

    kernel = _gating_kernel(K, E, EP, T, PACK_W)

    out_shape = (
        jax.ShapeDtypeStruct((T, E), jnp.float32),       # logits (.float())
        jax.ShapeDtypeStruct((T, PACK_W), pack_dtype),   # packed gates+indices
        jax.ShapeDtypeStruct((nblk, 1, EP), jnp.int32),  # partial counts
    )
    out_specs = [
        pl.BlockSpec((tm, E), lambda i: (i, 0)),
        pl.BlockSpec((tm, PACK_W), lambda i: (i, 0)),
        pl.BlockSpec((1, 1, EP), lambda i: (i, 0, 0)),
    ]

    def build(weight_buffers):
        if weight_buffers == 1:
            # Grid-invariant weight block -> a single resident VMEM buffer.
            w_spec = pl.BlockSpec((H, EP), lambda i: (0, 0),
                                  pipeline_mode=pl.Buffered(1))
        else:
            w_spec = pl.BlockSpec((H, EP), lambda i: (0, 0))
        return pl.pallas_call(
            kernel,
            out_shape=out_shape,
            grid_spec=pltpu.PrefetchScalarGridSpec(
                num_scalar_prefetch=0,
                grid=(nblk,),
                in_specs=[pl.BlockSpec((tm, H), lambda i: (i, 0)), w_spec],
                out_specs=out_specs,
            ),
            compiler_params=pltpu.CompilerParams(
                dimension_semantics=("parallel",),
                vmem_limit_bytes=vmem_limit),
        )

    try:
        logits, packed, counts = build(1)(hidden_states, w_t)
    except Exception:
        # pipeline_mode=pl.Buffered(1) unavailable -> default double buffering.
        logits, packed, counts = build(2)(hidden_states, w_t)

    gates = packed[:, :K].astype(jnp.float32)                # top-k gates
    idxs = packed[:, K:2 * K].astype(jnp.int32)              # top-k expert ids
    expert_size = jnp.sum(counts, axis=0).reshape(-1)[:E]    # (E,) int32

    # ---- data-dependent glue (group tokens by expert) in plain JAX ----
    # TODO(synk): the global sort of token->expert assignments is dynamic
    # gather/scatter glue with no clean single-kernel Pallas equivalent.
    top_k_experts = idxs.reshape(-1)                         # [T*K]
    index_sorted_experts = jnp.argsort(top_k_experts)        # stable
    batch_index = index_sorted_experts // K
    batch_gates = gates.reshape(-1)[index_sorted_experts].astype(dtype)

    return index_sorted_experts, batch_index, batch_gates, expert_size, logits


if __name__ == "__main__":
    # Small config: 20 tokens (exercises the ragged last block), input_size=32,
    # num_experts=8, top_k=2.
    T, H, E, K = 20, 32, 8, 2

    key = jax.random.PRNGKey(0)
    kx, kw = jax.random.split(key)
    hidden_states = jax.random.normal(kx, (T, H), dtype=jnp.float32)
    # nn.Linear default init: U(-1/sqrt(in), 1/sqrt(in)), shape [E, H]
    bound = 1.0 / (H ** 0.5)
    weight = jax.random.uniform(kw, (E, H), dtype=jnp.float32,
                                minval=-bound, maxval=bound)

    outs = granitemoe_topk_gating(hidden_states, weight, K)
    outs = jax.block_until_ready(outs)
    index_sorted_experts, batch_index, batch_gates, expert_size, logits = outs

    # sanity check against a pure-JAX reference
    ref_logits = jnp.dot(hidden_states, weight.T).astype(jnp.float32)
    ref_vals, ref_idx = jax.lax.top_k(ref_logits, K)
    ref_gates = jax.nn.softmax(ref_vals, axis=1)
    ref_counts = jnp.sum(jax.nn.one_hot(ref_idx, E, dtype=jnp.int32),
                         axis=(0, 1))

    assert logits.shape == (T, E) and logits.dtype == jnp.float32
    assert jnp.allclose(logits, ref_logits, atol=1e-4), "logits mismatch"
    assert jnp.allclose(jnp.sort(batch_gates), jnp.sort(ref_gates.reshape(-1)),
                        atol=1e-3, rtol=1e-3), "gates mismatch"
    assert jnp.array_equal(expert_size, ref_counts), "expert_size mismatch"
    assert int(expert_size.sum()) == T * K
    assert batch_index.shape == (T * K,)
    assert bool(jnp.all((batch_index >= 0) & (batch_index < T)))

    print("KERNEL_OK")
</pallas_src>

<mosaic_0001>
module attributes {stable_mosaic.version = 11 : i64} {
  func.func @kernel(%arg0: i32, %arg1: memref<16x32xf32, #tpu.memory_space<vmem>>, %arg2: memref<32x128xf32, #tpu.memory_space<vmem>>, %arg3: memref<16x8xf32, #tpu.memory_space<vmem>>, %arg4: memref<16x128xf32, #tpu.memory_space<vmem>>, %arg5: memref<1x1x128xi32, #tpu.memory_space<vmem>>) attributes {dimension_semantics = [#tpu.dimension_semantics<parallel>], iteration_bounds = array<i64: 2>, scalar_prefetch = 0 : i64, scratch_operands = 0 : i64, tpu.core_type = #tpu.core_type<tc>, window_params = [{transform_indices = @transform_0, window_bounds = array<i64: 16, 32>}, {pipeline_mode = #tpu.pipeline_mode<synchronous>, transform_indices = @transform_1, window_bounds = array<i64: 32, 128>}, {transform_indices = @transform_2, window_bounds = array<i64: 16, 8>}, {transform_indices = @transform_3, window_bounds = array<i64: 16, 128>}, {transform_indices = @transform_4, window_bounds = array<i64: 1, 1, 128>}]} {
    %c0 = arith.constant 0 : index
    %c0_0 = arith.constant 0 : index
    %0 = vector.load %arg1[%c0, %c0_0] : memref<16x32xf32, #tpu.memory_space<vmem>>, vector<16x32xf32>
    %c0_1 = arith.constant 0 : index
    %c0_2 = arith.constant 0 : index
    %1 = vector.load %arg2[%c0_1, %c0_2] : memref<32x128xf32, #tpu.memory_space<vmem>>, vector<32x128xf32>
    %cst = arith.constant dense<0.000000e+00> : vector<16x128xf32>
    %2 = tpu.matmul %0, %1, %cst {dimension_numbers = #tpu.dot_dimension_numbers<[1], [0], [0], [1], [0, 0, 1, 1], [], []>} : vector<16x32xf32>, vector<32x128xf32>, vector<16x128xf32> -> vector<16x128xf32>
    %3 = vector.extract_strided_slice %2 {offsets = [0, 0], sizes = [16, 8], strides = [1, 1]} : vector<16x128xf32> to vector<16x8xf32>
    %c0_3 = arith.constant 0 : index
    %c0_4 = arith.constant 0 : index
    %4 = vector.load %arg3[%c0_3, %c0_4] : memref<16x8xf32, #tpu.memory_space<vmem>>, vector<16x8xf32>
    tpu.vector_store %arg3[%c0_3, %c0_4], %3 {strides = array<i32>} : memref<16x8xf32, #tpu.memory_space<vmem>>, vector<16x8xf32>,
    %5 = tpu.iota {dimensions = array<i32: 1>} : vector<16x128xi32>
    %6 = tpu.iota {dimensions = array<i32: 0>} : vector<16x1xi32>
    %c16_i32 = arith.constant 16 : i32
    %7 = arith.muli %arg0, %c16_i32 : i32
    %8 = vector.broadcast %7 : i32 to vector<16x1xi32>
    %9 = arith.addi %8, %6 : vector<16x1xi32>
    %c20_i32 = arith.constant 20 : i32
    %10 = vector.broadcast %c20_i32 : i32 to vector<16x1xi32>
    %11 = arith.cmpi slt, %9, %10 : vector<16x1xi32>
    %c8_i32 = arith.constant 8 : i32
    %12 = vector.broadcast %c8_i32 : i32 to vector<16x128xi32>
    %13 = arith.cmpi slt, %5, %12 : vector<16x128xi32>
    %cst_5 = arith.constant 0xFF800000 : f32
    %14 = vector.broadcast %cst_5 : f32 to vector<16x128xf32>
    %15 = arith.select %13, %2, %14 : vector<16x128xi1>, vector<16x128xf32>
    %c0_i32 = arith.constant 0 : i32
    %16 = vector.broadcast %c0_i32 : i32 to vector<16x128xi32>
    %cst_6 = arith.constant dense<0xFF800000> : vector<16xf32>
    %17 = vector.multi_reduction <maximumf>, %15, %cst_6 [1] : vector<16x128xf32> to vector<16xf32>
    %18 = vector.shape_cast %17 : vector<16xf32> to vector<16x1xf32>
    %19 = vector.broadcast %18 : vector<16x1xf32> to vector<16x128xf32>
    %20 = arith.cmpf oeq, %15, %19 : vector<16x128xf32>
    %c128_i32 = arith.constant 128 : i32
    %21 = vector.broadcast %c128_i32 : i32 to vector<16x128xi32>
    %22 = arith.select %20, %5, %21 : vector<16x128xi1>, vector<16x128xi32>
    %cst_7 = arith.constant dense<2147483647> : vector<16xi32>
    %23 = vector.multi_reduction <minsi>, %22, %cst_7 [1] : vector<16x128xi32> to vector<16xi32>
    %24 = vector.shape_cast %23 : vector<16xi32> to vector<16x1xi32>
    %25 = vector.broadcast %24 : vector<16x1xi32> to vector<16x128xi32>
    %26 = arith.cmpi eq, %5, %25 : vector<16x128xi32>
    %27 = arith.extui %26 : vector<16x128xi1> to vector<16x128xi32>
    %28 = arith.addi %16, %27 : vector<16x128xi32>
    %cst_8 = arith.constant 0xFF800000 : f32
    %29 = vector.broadcast %cst_8 : f32 to vector<16x128xf32>
    %30 = arith.select %26, %29, %15 : vector<16x128xi1>, vector<16x128xf32>
    %cst_9 = arith.constant dense<0xFF800000> : vector<16xf32>
    %31 = vector.multi_reduction <maximumf>, %30, %cst_9 [1] : vector<16x128xf32> to vector<16xf32>
    %32 = vector.shape_cast %31 : vector<16xf32> to vector<16x1xf32>
    %33 = vector.broadcast %32 : vector<16x1xf32> to vector<16x128xf32>
    %34 = arith.cmpf oeq, %30, %33 : vector<16x128xf32>
    %c128_i32_10 = arith.constant 128 : i32
    %35 = vector.broadcast %c128_i32_10 : i32 to vector<16x128xi32>
    %36 = arith.select %34, %5, %35 : vector<16x128xi1>, vector<16x128xi32>
    %cst_11 = arith.constant dense<2147483647> : vector<16xi32>
    %37 = vector.multi_reduction <minsi>, %36, %cst_11 [1] : vector<16x128xi32> to vector<16xi32>
    %38 = vector.shape_cast %37 : vector<16xi32> to vector<16x1xi32>
    %39 = vector.broadcast %38 : vector<16x1xi32> to vector<16x128xi32>
    %40 = arith.cmpi eq, %5, %39 : vector<16x128xi32>
    %41 = arith.extui %40 : vector<16x128xi1> to vector<16x128xi32>
    %42 = arith.addi %28, %41 : vector<16x128xi32>
    %c0_i32_12 = arith.constant 0 : i32
    %43 = vector.shape_cast %11 : vector<16x1xi1> to vector<16x1xi1>
    %44 = vector.broadcast %43 : vector<16x1xi1> to vector<16x128xi1>
    %45 = vector.broadcast %c0_i32_12 : i32 to vector<16x128xi32>
    %46 = arith.select %44, %42, %45 : vector<16x128xi1>, vector<16x128xi32>
    %cst_13 = arith.constant dense<0> : vector<128xi32>
    %47 = vector.multi_reduction <add>, %46, %cst_13 [0] : vector<16x128xi32> to vector<128xi32>
    %48 = vector.shape_cast %47 : vector<128xi32> to vector<1x128xi32>
    %49 = vector.shape_cast %48 : vector<1x128xi32> to vector<1x1x128xi32>
    %c0_14 = arith.constant 0 : index
    %c0_15 = arith.constant 0 : index
    %c0_16 = arith.constant 0 : index
    %50 = vector.load %arg5[%c0_14, %c0_15, %c0_16] : memref<1x1x128xi32, #tpu.memory_space<vmem>>, vector<1x1x128xi32>
    tpu.vector_store %arg5[%c0_14, %c0_15, %c0_16], %49 {strides = array<i32>} : memref<1x1x128xi32, #tpu.memory_space<vmem>>, vector<1x1x128xi32>,
    %51 = arith.subf %18, %18 : vector<16x1xf32>
    %52 = math.exp %51 : vector<16x1xf32>
    %53 = arith.subf %32, %18 : vector<16x1xf32>
    %54 = math.exp %53 : vector<16x1xf32>
    %55 = arith.addf %52, %54 : vector<16x1xf32>
    %cst_17 = arith.constant 1.000000e+00 : f32
    %56 = vector.broadcast %cst_17 : f32 to vector<16x1xf32>
    %57 = arith.divf %56, %55 : vector<16x1xf32>
    %cst_18 = arith.constant 0.000000e+00 : f32
    %58 = vector.broadcast %cst_18 : f32 to vector<16x128xf32>
    %c0_i32_19 = arith.constant 0 : i32
    %59 = vector.broadcast %c0_i32_19 : i32 to vector<16x128xi32>
    %60 = arith.cmpi eq, %5, %59 : vector<16x128xi32>
    %61 = arith.mulf %52, %57 : vector<16x1xf32>
    %62 = vector.shape_cast %61 : vector<16x1xf32> to vector<16x1xf32>
    %63 = vector.broadcast %62 : vector<16x1xf32> to vector<16x128xf32>
    %64 = arith.select %60, %63, %58 : vector<16x128xi1>, vector<16x128xf32>
    %c2_i32 = arith.constant 2 : i32
    %65 = vector.broadcast %c2_i32 : i32 to vector<16x128xi32>
    %66 = arith.cmpi eq, %5, %65 : vector<16x128xi32>
    %67 = arith.sitofp %24 : vector<16x1xi32> to vector<16x1xf32>
    %68 = vector.shape_cast %67 : vector<16x1xf32> to vector<16x1xf32>
    %69 = vector.broadcast %68 : vector<16x1xf32> to vector<16x128xf32>
    %70 = arith.select %66, %69, %64 : vector<16x128xi1>, vector<16x128xf32>
    %c1_i32 = arith.constant 1 : i32
    %71 = vector.broadcast %c1_i32 : i32 to vector<16x128xi32>
    %72 = arith.cmpi eq, %5, %71 : vector<16x128xi32>
    %73 = arith.mulf %54, %57 : vector<16x1xf32>
    %74 = vector.shape_cast %73 : vector<16x1xf32> to vector<16x1xf32>
    %75 = vector.broadcast %74 : vector<16x1xf32> to vector<16x128xf32>
    %76 = arith.select %72, %75, %70 : vector<16x128xi1>, vector<16x128xf32>
    %c3_i32 = arith.constant 3 : i32
    %77 = vector.broadcast %c3_i32 : i32 to vector<16x128xi32>
    %78 = arith.cmpi eq, %5, %77 : vector<16x128xi32>
    %79 = arith.sitofp %38 : vector<16x1xi32> to vector<16x1xf32>
    %80 = vector.shape_cast %79 : vector<16x1xf32> to vector<16x1xf32>
    %81 = vector.broadcast %80 : vector<16x1xf32> to vector<16x128xf32>
    %82 = arith.select %78, %81, %76 : vector<16x128xi1>, vector<16x128xf32>
    %c0_20 = arith.constant 0 : index
    %c0_21 = arith.constant 0 : index
    %83 = vector.load %arg4[%c0_20, %c0_21] : memref<16x128xf32, #tpu.memory_space<vmem>>, vector<16x128xf32>
    tpu.vector_store %arg4[%c0_20, %c0_21], %82 {strides = array<i32>} : memref<16x128xf32, #tpu.memory_space<vmem>>, vector<16x128xf32>,
    return
  }
  func.func @transform_0(%arg0: i32) -> (i32, i32) {
    %c0_i32 = arith.constant 0 : i32
    %c0_i32_0 = arith.constant 0 : i32
    return %arg0, %c0_i32 : i32, i32
  }
  func.func @transform_1(%arg0: i32) -> (i32, i32) {
    %c0_i32 = arith.constant 0 : i32
    %c0_i32_0 = arith.constant 0 : i32
    %c0_i32_1 = arith.constant 0 : i32
    return %c0_i32, %c0_i32_0 : i32, i32
  }
  func.func @transform_2(%arg0: i32) -> (i32, i32) {
    %c0_i32 = arith.constant 0 : i32
    %c0_i32_0 = arith.constant 0 : i32
    return %arg0, %c0_i32 : i32, i32
  }
  func.func @transform_3(%arg0: i32) -> (i32, i32) {
    %c0_i32 = arith.constant 0 : i32
    %c0_i32_0 = arith.constant 0 : i32
    return %arg0, %c0_i32 : i32, i32
  }
  func.func @transform_4(%arg0: i32) -> (i32, i32, i32) {
    %c0_i32 = arith.constant 0 : i32
    %c0_i32_0 = arith.constant 0 : i32
    %c0_i32_1 = arith.constant 0 : i32
    return %arg0, %c0_i32, %c0_i32_0 : i32, i32, i32
  }
}

module attributes {stable_mosaic.version = 11 : i64} {
  func.func @kernel(%arg0: i32, %arg1: memref<16x32xf32, #tpu.memory_space<vmem>>, %arg2: memref<32x128xf32, #tpu.memory_space<vmem>>, %arg3: memref<16x8xf32, #tpu.memory_space<vmem>>, %arg4: memref<16x128xf32, #tpu.memory_space<vmem>>, %arg5: memref<1x1x128xi32, #tpu.memory_space<vmem>>) attributes {dimension_semantics = [#tpu.dimension_semantics<parallel>], iteration_bounds = array<i64: 2>, scalar_prefetch = 0 : i64, scratch_operands = 0 : i64, tpu.core_type = #tpu.core_type<tc>, window_params = [{transform_indices = @transform_0, window_bounds = array<i64: 16, 32>}, {pipeline_mode = #tpu.pipeline_mode<synchronous>, transform_indices = @transform_1, window_bounds = array<i64: 32, 128>}, {transform_indices = @transform_2, window_bounds = array<i64: 16, 8>}, {transform_indices = @transform_3, window_bounds = array<i64: 16, 128>}, {transform_indices = @transform_4, window_bounds = array<i64: 1, 1, 128>}]} {
    %c0 = arith.constant 0 : index
    %c0_0 = arith.constant 0 : index
    %0 = vector.load %arg1[%c0, %c0_0] : memref<16x32xf32, #tpu.memory_space<vmem>>, vector<16x32xf32>
    %c0_1 = arith.constant 0 : index
    %c0_2 = arith.constant 0 : index
    %1 = vector.load %arg2[%c0_1, %c0_2] : memref<32x128xf32, #tpu.memory_space<vmem>>, vector<32x128xf32>
    %cst = arith.constant dense<0.000000e+00> : vector<16x128xf32>
    %2 = tpu.matmul %0, %1, %cst {dimension_numbers = #tpu.dot_dimension_numbers<[1], [0], [0], [1], [0, 0, 1, 1], [], []>} : vector<16x32xf32>, vector<32x128xf32>, vector<16x128xf32> -> vector<16x128xf32>
    %3 = vector.extract_strided_slice %2 {offsets = [0, 0], sizes = [16, 8], strides = [1, 1]} : vector<16x128xf32> to vector<16x8xf32>
    %c0_3 = arith.constant 0 : index
    %c0_4 = arith.constant 0 : index
    %4 = vector.load %arg3[%c0_3, %c0_4] : memref<16x8xf32, #tpu.memory_space<vmem>>, vector<16x8xf32>
    tpu.vector_store %arg3[%c0_3, %c0_4], %3 {strides = array<i32>} : memref<16x8xf32, #tpu.memory_space<vmem>>, vector<16x8xf32>,
    %5 = tpu.iota {dimensions = array<i32: 1>} : vector<16x128xi32>
    %6 = tpu.iota {dimensions = array<i32: 0>} : vector<16x1xi32>
    %c16_i32 = arith.constant 16 : i32
    %7 = arith.muli %arg0, %c16_i32 : i32
    %8 = vector.broadcast %7 : i32 to vector<16x1xi32>
    %9 = arith.addi %8, %6 : vector<16x1xi32>
    %c20_i32 = arith.constant 20 : i32
    %10 = vector.broadcast %c20_i32 : i32 to vector<16x1xi32>
    %11 = arith.cmpi slt, %9, %10 : vector<16x1xi32>
    %c8_i32 = arith.constant 8 : i32
    %12 = vector.broadcast %c8_i32 : i32 to vector<16x128xi32>
    %13 = arith.cmpi slt, %5, %12 : vector<16x128xi32>
    %cst_5 = arith.constant 0xFF800000 : f32
    %14 = vector.broadcast %cst_5 : f32 to vector<16x128xf32>
    %15 = arith.select %13, %2, %14 : vector<16x128xi1>, vector<16x128xf32>
    %c0_i32 = arith.constant 0 : i32
    %16 = vector.broadcast %c0_i32 : i32 to vector<16x128xi32>
    %cst_6 = arith.constant dense<0xFF800000> : vector<16xf32>
    %17 = vector.multi_reduction <maximumf>, %15, %cst_6 [1] : vector<16x128xf32> to vector<16xf32>
    %18 = vector.shape_cast %17 : vector<16xf32> to vector<16x1xf32>
    %19 = vector.broadcast %18 : vector<16x1xf32> to vector<16x128xf32>
    %20 = arith.cmpf oeq, %15, %19 : vector<16x128xf32>
    %c128_i32 = arith.constant 128 : i32
    %21 = vector.broadcast %c128_i32 : i32 to vector<16x128xi32>
    %22 = arith.select %20, %5, %21 : vector<16x128xi1>, vector<16x128xi32>
    %cst_7 = arith.constant dense<2147483647> : vector<16xi32>
    %23 = vector.multi_reduction <minsi>, %22, %cst_7 [1] : vector<16x128xi32> to vector<16xi32>
    %24 = vector.shape_cast %23 : vector<16xi32> to vector<16x1xi32>
    %25 = vector.broadcast %24 : vector<16x1xi32> to vector<16x128xi32>
    %26 = arith.cmpi eq, %5, %25 : vector<16x128xi32>
    %27 = arith.extui %26 : vector<16x128xi1> to vector<16x128xi32>
    %28 = arith.addi %16, %27 : vector<16x128xi32>
    %cst_8 = arith.constant 0xFF800000 : f32
    %29 = vector.broadcast %cst_8 : f32 to vector<16x128xf32>
    %30 = arith.select %26, %29, %15 : vector<16x128xi1>, vector<16x128xf32>
    %cst_9 = arith.constant dense<0xFF800000> : vector<16xf32>
    %31 = vector.multi_reduction <maximumf>, %30, %cst_9 [1] : vector<16x128xf32> to vector<16xf32>
    %32 = vector.shape_cast %31 : vector<16xf32> to vector<16x1xf32>
    %33 = vector.broadcast %32 : vector<16x1xf32> to vector<16x128xf32>
    %34 = arith.cmpf oeq, %30, %33 : vector<16x128xf32>
    %c128_i32_10 = arith.constant 128 : i32
    %35 = vector.broadcast %c128_i32_10 : i32 to vector<16x128xi32>
    %36 = arith.select %34, %5, %35 : vector<16x128xi1>, vector<16x128xi32>
    %cst_11 = arith.constant dense<2147483647> : vector<16xi32>
    %37 = vector.multi_reduction <minsi>, %36, %cst_11 [1] : vector<16x128xi32> to vector<16xi32>
    %38 = vector.shape_cast %37 : vector<16xi32> to vector<16x1xi32>
    %39 = vector.broadcast %38 : vector<16x1xi32> to vector<16x128xi32>
    %40 = arith.cmpi eq, %5, %39 : vector<16x128xi32>
    %41 = arith.extui %40 : vector<16x128xi1> to vector<16x128xi32>
    %42 = arith.addi %28, %41 : vector<16x128xi32>
    %c0_i32_12 = arith.constant 0 : i32
    %43 = vector.shape_cast %11 : vector<16x1xi1> to vector<16x1xi1>
    %44 = vector.broadcast %43 : vector<16x1xi1> to vector<16x128xi1>
    %45 = vector.broadcast %c0_i32_12 : i32 to vector<16x128xi32>
    %46 = arith.select %44, %42, %45 : vector<16x128xi1>, vector<16x128xi32>
    %cst_13 = arith.constant dense<0> : vector<128xi32>
    %47 = vector.multi_reduction <add>, %46, %cst_13 [0] : vector<16x128xi32> to vector<128xi32>
    %48 = vector.shape_cast %47 : vector<128xi32> to vector<1x128xi32>
    %49 = vector.shape_cast %48 : vector<1x128xi32> to vector<1x1x128xi32>
    %c0_14 = arith.constant 0 : index
    %c0_15 = arith.constant 0 : index
    %c0_16 = arith.constant 0 : index
    %50 = vector.load %arg5[%c0_14, %c0_15, %c0_16] : memref<1x1x128xi32, #tpu.memory_space<vmem>>, vector<1x1x128xi32>
    tpu.vector_store %arg5[%c0_14, %c0_15, %c0_16], %49 {strides = array<i32>} : memref<1x1x128xi32, #tpu.memory_space<vmem>>, vector<1x1x128xi32>,
    %51 = arith.subf %18, %18 : vector<16x1xf32>
    %52 = math.exp %51 : vector<16x1xf32>
    %53 = arith.subf %32, %18 : vector<16x1xf32>
    %54 = math.exp %53 : vector<16x1xf32>
    %55 = arith.addf %52, %54 : vector<16x1xf32>
    %cst_17 = arith.constant 1.000000e+00 : f32
    %56 = vector.broadcast %cst_17 : f32 to vector<16x1xf32>
    %57 = arith.divf %56, %55 : vector<16x1xf32>
    %cst_18 = arith.constant 0.000000e+00 : f32
    %58 = vector.broadcast %cst_18 : f32 to vector<16x128xf32>
    %c0_i32_19 = arith.constant 0 : i32
    %59 = vector.broadcast %c0_i32_19 : i32 to vector<16x128xi32>
    %60 = arith.cmpi eq, %5, %59 : vector<16x128xi32>
    %61 = arith.mulf %52, %57 : vector<16x1xf32>
    %62 = vector.shape_cast %61 : vector<16x1xf32> to vector<16x1xf32>
    %63 = vector.broadcast %62 : vector<16x1xf32> to vector<16x128xf32>
    %64 = arith.select %60, %63, %58 : vector<16x128xi1>, vector<16x128xf32>
    %c2_i32 = arith.constant 2 : i32
    %65 = vector.broadcast %c2_i32 : i32 to vector<16x128xi32>
    %66 = arith.cmpi eq, %5, %65 : vector<16x128xi32>
    %67 = arith.sitofp %24 : vector<16x1xi32> to vector<16x1xf32>
    %68 = vector.shape_cast %67 : vector<16x1xf32> to vector<16x1xf32>
    %69 = vector.broadcast %68 : vector<16x1xf32> to vector<16x128xf32>
    %70 = arith.select %66, %69, %64 : vector<16x128xi1>, vector<16x128xf32>
    %c1_i32 = arith.constant 1 : i32
    %71 = vector.broadcast %c1_i32 : i32 to vector<16x128xi32>
    %72 = arith.cmpi eq, %5, %71 : vector<16x128xi32>
    %73 = arith.mulf %54, %57 : vector<16x1xf32>
    %74 = vector.shape_cast %73 : vector<16x1xf32> to vector<16x1xf32>
    %75 = vector.broadcast %74 : vector<16x1xf32> to vector<16x128xf32>
    %76 = arith.select %72, %75, %70 : vector<16x128xi1>, vector<16x128xf32>
    %c3_i32 = arith.constant 3 : i32
    %77 = vector.broadcast %c3_i32 : i32 to vector<16x128xi32>
    %78 = arith.cmpi eq, %5, %77 : vector<16x128xi32>
    %79 = arith.sitofp %38 : vector<16x1xi32> to vector<16x1xf32>
    %80 = vector.shape_cast %79 : vector<16x1xf32> to vector<16x1xf32>
    %81 = vector.broadcast %80 : vector<16x1xf32> to vector<16x128xf32>
    %82 = arith.select %78, %81, %76 : vector<16x128xi1>, vector<16x128xf32>
    %c0_20 = arith.constant 0 : index
    %c0_21 = arith.constant 0 : index
    %83 = vector.load %arg4[%c0_20, %c0_21] : memref<16x128xf32, #tpu.memory_space<vmem>>, vector<16x128xf32>
    tpu.vector_store %arg4[%c0_20, %c0_21], %82 {strides = array<i32>} : memref<16x128xf32, #tpu.memory_space<vmem>>, vector<16x128xf32>,
    return
  }
  func.func @transform_0(%arg0: i32) -> (i32, i32) {
    %c0_i32 = arith.constant 0 : i32
    %c0_i32_0 = arith.constant 0 : i32
    return %arg0, %c0_i32 : i32, i32
  }
  func.func @transform_1(%arg0: i32) -> (i32, i32) {
    %c0_i32 = arith.constant 0 : i32
    %c0_i32_0 = arith.constant 0 : i32
    %c0_i32_1 = arith.constant 0 : i32
    return %c0_i32, %c0_i32_0 : i32, i32
  }
  func.func @transform_2(%arg0: i32) -> (i32, i32) {
    %c0_i32 = arith.constant 0 : i32
    %c0_i32_0 = arith.constant 0 : i32
    return %arg0, %c0_i32 : i32, i32
  }
  func.func @transform_3(%arg0: i32) -> (i32, i32) {
    %c0_i32 = arith.constant 0 : i32
    %c0_i32_0 = arith.constant 0 : i32
    return %arg0, %c0_i32 : i32, i32
  }
  func.func @transform_4(%arg0: i32) -> (i32, i32, i32) {
    %c0_i32 = arith.constant 0 : i32
    %c0_i32_0 = arith.constant 0 : i32
    %c0_i32_1 = arith.constant 0 : i32
    return %arg0, %c0_i32, %c0_i32_0 : i32, i32, i32
  }
}

</mosaic_0001>

<llo_original>
// kernel: tpu_custom_call.1
$region0: #{tpu_custom_call.1}
  #allocation0 [shape = 'u32[]', space=smem, size = 0x4, offset = 0x4, fixed_abs, tag = 'smem constant byte address 0x4 - core index']
  #allocation1 [shape = 'u32[72,128]{1,0:T(1,128)}', space=vmem, size = 0x9000, scoped, tag = 'internal scratch']
  %s0 = inlined_call_operand.hbm [shape: f32[20,32], index: 0, kind: input, shape index: {}]
  %s1 = inlined_call_operand.hbm [shape: f32[32,128], index: 1, kind: input, shape index: {}]
  %s2 = inlined_call_operand.vmem [shape: f32[20,8], index: 2, kind: output, shape index: {0}]
  %s3 = inlined_call_operand.hbm [shape: f32[20,128], index: 3, kind: output, shape index: {1}]
  %s4 = inlined_call_operand.hbm [shape: s32[2,1,128], index: 4, kind: output, shape index: {2}]
  %5 = xla_tuple %s2, %s3, %s4
  %s6 = sld [smem:[#allocation0]]
  $region113: #{tpu_custom_call.1} parent=0
    _
  %s8 = ssub.s32 1, %s6
  %s9 = scalar_select 0, %s8, %s6
  $region1: #{tpu_custom_call.1} parent=0
    #allocation2 [shape = 'u8[16384]{0}', space=vmem, size = 0x4000, scoped, tag = 'input window, operand 0']
    #allocation3 [shape = 's32[2]{0}', space=sflag, size = 0x8, scoped, tag = 'scoped memory for tpu_custom_call.1']
    #allocation4 [shape = 's32[2]{0}', space=sflag, size = 0x8, scoped, tag = 'scoped memory for tpu_custom_call.1']
    #allocation5 [shape = 'u8[16384]{0}', space=vmem, size = 0x4000, scoped, tag = 'input window, operand 1, single buffered']
    #allocation6 [shape = 's32[1]{0}', space=sflag, size = 0x4, scoped, tag = 'scoped memory for tpu_custom_call.1']
    #allocation7 [shape = 'u8[16384]{0}', space=vmem, size = 0x4000, scoped, tag = 'output window, operand 0']
    #allocation8 [shape = 'u8[16384]{0}', space=vmem, size = 0x4000, scoped, tag = 'output window, operand 1']
    #allocation9 [shape = 'u8[1024]{0}', space=vmem, size = 0x400, scoped, tag = 'output window, operand 2']
    #allocation10 [shape = 's32[2]{0}', space=sflag, size = 0x8, scoped, tag = 'scoped memory for tpu_custom_call.1']
    %10 = vsyncpa [#allocation3], 0
    %s11 = scalar_lea.sflag [#allocation3], 1
    %12 = vsyncpa %s11, 0
    %13 = vsyncpa [#allocation6], 0
    %14 = vsyncpa [#allocation4], 0
    %s15 = scalar_lea.sflag [#allocation4], 1
    %16 = vsyncpa %s15, 0
    %17 = vsyncpa [#allocation10], 0
    %s18 = scalar_lea.sflag [#allocation10], 1
    %19 = vsyncpa %s18, 0
    loop: start=0, step=1, limit=4
    $region2: #{tpu_custom_call.1} parent=1 // loop_pre_header
      _
    $region3: #{tpu_custom_call.1} parent=1 // loop_header
      %s21 = sphi 0, %s25
      %p22 = scmp.ge.s32.totalorder %s21, 4
      %s31 = sphi 0, %s33
      %s34 = sphi 0, %s31
      %s35 = sphi 0, %s34
      %s51 = sphi 0, %s35
      %s55 = sphi 0, %s55
      %s57 = sphi 0, %s55
      %s58 = sphi 0, %s57
      %s72 = sphi 0, %s58
      %s78 = sphi 0, %s80
      %s81 = sphi 0, %s78
      %s82 = sphi 0, %s81
      %s98 = sphi 0, %s82
      %s104 = sphi 0, %s106
      %s107 = sphi 0, %s104
      %s108 = sphi 0, %s107
      %s124 = sphi 0, %s108
      %s130 = sphi 0, %s132
      %s133 = sphi 0, %s130
      %s134 = sphi 0, %s133
      %s150 = sphi 0, %s134
    $region4: #{tpu_custom_call.1} parent=1 // loop_header_branch
      %24 = sbr.rel (%p22) target = $region8
    $region5: #{tpu_custom_call.1} parent=1 // loop_body
      %s26 = ssub.s32 %s21, 1
      %s27 = ssub.s32 %s21, 2
      %s28 = sadd.s32 %s21, 1
      %s29 = ssub.s32 %s21, %s28
      %p30 = scmp.eq.s32.totalorder %s29, 0
      %s32 = sadd.s32 %s31, 1
      %s33 = scalar_select %p30, %s31, %s32
      %p36 = pneg %p30
      %p37 = scmp.eq.s32.totalorder %s21, 1
      %p38 = por %p36, %p37
      %p39 = scmp.ne.s32.totalorder %s31, %s34
      %p40 = scmp.eq.s32.totalorder %s21, 0
      %p41 = por %p39, %p40
      %p42 = scmp.ne.s32.totalorder %s31, %s34
      %p43 = scmp.eq.s32.totalorder %s26, 1
      %p44 = por %p42, %p43
      %p45 = scmp.ne.s32.totalorder %s34, %s35
      %p46 = scmp.eq.s32.totalorder %s26, 0
      %p47 = por %p45, %p46
      %p48 = scmp.ne.s32.totalorder %s34, %s35
      %p49 = scmp.eq.s32.totalorder %s27, 1
      %p50 = por %p48, %p49
      %p52 = scmp.ne.s32.totalorder %s35, %s51
      %p53 = scmp.eq.s32.totalorder %s27, 0
      %p54 = por %p52, %p53
      %s56 = sadd.s32 %s55, 1
      %p59 = scmp.eq.s32.totalorder %s21, 1
      %p60 = scmp.ne.s32.totalorder %s55, %s57
      %p61 = scmp.eq.s32.totalorder %s21, 0
      %p62 = por %p60, %p61
      %p63 = scmp.ne.s32.totalorder %s55, %s57
      %p64 = scmp.eq.s32.totalorder %s26, 1
      %p65 = por %p63, %p64
      %p66 = scmp.ne.s32.totalorder %s57, %s58
      %p67 = scmp.eq.s32.totalorder %s26, 0
      %p68 = por %p66, %p67
      %p69 = scmp.ne.s32.totalorder %s57, %s58
      %p70 = scmp.eq.s32.totalorder %s27, 1
      %p71 = por %p69, %p70
      %p73 = scmp.ne.s32.totalorder %s58, %s72
      %p74 = scmp.eq.s32.totalorder %s27, 0
      %p75 = por %p73, %p74
      %s76 = ssub.s32 %s21, %s28
      %p77 = scmp.eq.s32.totalorder %s76, 0
      %s79 = sadd.s32 %s78, 1
      %s80 = scalar_select %p77, %s78, %s79
      %p83 = pneg %p77
      %p84 = scmp.eq.s32.totalorder %s21, 1
      %p85 = por %p83, %p84
      %p86 = scmp.ne.s32.totalorder %s78, %s81
      %p87 = scmp.eq.s32.totalorder %s21, 0
      %p88 = por %p86, %p87
      %p89 = scmp.ne.s32.totalorder %s78, %s81
      %p90 = scmp.eq.s32.totalorder %s26, 1
      %p91 = por %p89, %p90
      %p92 = scmp.ne.s32.totalorder %s81, %s82
      %p93 = scmp.eq.s32.totalorder %s26, 0
      %p94 = por %p92, %p93
      %p95 = scmp.ne.s32.totalorder %s81, %s82
      %p96 = scmp.eq.s32.totalorder %s27, 1
      %p97 = por %p95, %p96
      %p99 = scmp.ne.s32.totalorder %s82, %s98
      %p100 = scmp.eq.s32.totalorder %s27, 0
      %p101 = por %p99, %p100
      %s102 = ssub.s32 %s21, %s28
      %p103 = scmp.eq.s32.totalorder %s102, 0
      %s105 = sadd.s32 %s104, 1
      %s106 = scalar_select %p103, %s104, %s105
      %p109 = pneg %p103
      %p110 = scmp.eq.s32.totalorder %s21, 1
      %p111 = por %p109, %p110
      %p112 = scmp.ne.s32.totalorder %s104, %s107
      %p113 = scmp.eq.s32.totalorder %s21, 0
      %p114 = por %p112, %p113
      %p115 = scmp.ne.s32.totalorder %s104, %s107
      %p116 = scmp.eq.s32.totalorder %s26, 1
      %p117 = por %p115, %p116
      %p118 = scmp.ne.s32.totalorder %s107, %s108
      %p119 = scmp.eq.s32.totalorder %s26, 0
      %p120 = por %p118, %p119
      %p121 = scmp.ne.s32.totalorder %s107, %s108
      %p122 = scmp.eq.s32.totalorder %s27, 1
      %p123 = por %p121, %p122
      %p125 = scmp.ne.s32.totalorder %s108, %s124
      %p126 = scmp.eq.s32.totalorder %s27, 0
      %p127 = por %p125, %p126
      %s128 = ssub.s32 %s21, %s28
      %p129 = scmp.eq.s32.totalorder %s128, 0
      %s131 = sadd.s32 %s130, 1
      %s132 = scalar_select %p129, %s130, %s131
      %p135 = pneg %p129
      %p136 = scmp.eq.s32.totalorder %s21, 1
      %p137 = por %p135, %p136
      %p138 = scmp.ne.s32.totalorder %s130, %s133
      %p139 = scmp.eq.s32.totalorder %s21, 0
      %p140 = por %p138, %p139
      %p141 = scmp.ne.s32.totalorder %s130, %s133
      %p142 = scmp.eq.s32.totalorder %s26, 1
      %p143 = por %p141, %p142
      %p144 = scmp.ne.s32.totalorder %s133, %s134
      %p145 = scmp.eq.s32.totalorder %s26, 0
      %p146 = por %p144, %p145
      %p147 = scmp.ne.s32.totalorder %s133, %s134
      %p148 = scmp.eq.s32.totalorder %s27, 1
      %p149 = por %p147, %p148
      %p151 = scmp.ne.s32.totalorder %s134, %s150
      %p152 = scmp.eq.s32.totalorder %s27, 0
      %p153 = por %p151, %p152
      %p154 = scmp.le.s32.totalorder 1, %s21
      %p155 = scmp.lt.s32.totalorder %s21, 3
      %p156 = pnand %p154, %p155
      %p157 = pneg %p156
      // Predicated region
      $region9: #{tpu_custom_call.1} parent=5 // pred_check
        _
      $region10: #{tpu_custom_call.1} parent=5 // pred_check_branch
        %159 = sbr.rel (%p156) target = $region12
      $region11: #{tpu_custom_call.1} parent=5 // pred_region
        %s160 = ssub.s32 %s21, 1
        // Predicated region
        $region13: #{tpu_custom_call.1} parent=11 // pred_check
          %p161 = pneg %p68
        $region14: #{tpu_custom_call.1} parent=11 // pred_check_branch
          %163 = sbr.rel (%p161) target = $region16
        $region15: #{tpu_custom_call.1} parent=11 // pred_region
          %165 = vsyncadd [#allocation6], 0
          %s166 = sshll.u32 %s1, 4
          %s167 = int_to_ptr.hbm [resolvable:$true] %s166
          %s168 = sshll.u32 [#allocation5], 4
          %s169 = int_to_ptr.vmem [resolvable:$true] %s168
          %174 = dma.hbm_to_vmem [thread:$0]  %s167, 512, %s169, [#allocation6], 128, 128, 8
        $region16: #{tpu_custom_call.1} parent=11 // pred_fallthru
          _
      $region12: #{tpu_custom_call.1} parent=5 // pred_fallthru
        _
      %p175 = scmp.lt.s32.totalorder %s21, 2
      // Predicated region
      $region17: #{tpu_custom_call.1} parent=5 // pred_check
        %p176 = pneg %p175
      $region18: #{tpu_custom_call.1} parent=5 // pred_check_branch
        %178 = sbr.rel (%p176) target = $region20
      $region19: #{tpu_custom_call.1} parent=5 // pred_region
        // Predicated region
        $region21: #{tpu_custom_call.1} parent=19 // pred_check
          %p179 = pneg %p41
        $region22: #{tpu_custom_call.1} parent=19 // pred_check_branch
          %181 = sbr.rel (%p179) target = $region24
        $region23: #{tpu_custom_call.1} parent=19 // pred_region
          %s182 = sand.u32 %s31, 1
          %s183 = scalar_lea.sflag [#allocation3], %s182
          %s184 = sand.u32 %s31, 1
          %s185 = smul.addr %s184, 16
          %s186 = scalar_lea.vmem [#allocation2], %s185
          %s187 = smul.u32 2, %s21
          %s188 = ssub.s32 3, %s187
          %p189 = scmp.lt.s32.totalorder %s188, 2
          %s190 = scalar_select %p189, %s188, 2
          %s191 = smul.u32 8, %s190
          %s192 = ssub.s32 16, %s191
          %s193 = sshll.u32 %s192, 4
          %194 = vsyncadd %s183, %s193
          %p195 = scmp.ne.s32.totalorder 0, %s191
          %s196 = smul.addr %s187, 8
          %s197 = scalar_lea.hbm %s0, %s196
          %s198 = smul.u32 8, %s190
          %s199 = sshll.u32 %s197, 4
          %s200 = int_to_ptr.hbm [resolvable:$true] %s199
          %s201 = sshll.u32 %s186, 4
          %s202 = int_to_ptr.vmem [resolvable:$true] %s201
          %s203 = sshll.u32 %s198, 4
          %207 = dma.hbm_to_vmem [thread:$0]  (%p195), %s200, %s203, %s202, %s183, 128, 128, 8
        $region24: #{tpu_custom_call.1} parent=19 // pred_fallthru
          _
      $region20: #{tpu_custom_call.1} parent=5 // pred_fallthru
        _
      %p208 = scmp.le.s32.totalorder 1, %s21
      %p209 = scmp.lt.s32.totalorder %s21, 3
      %p210 = pnand %p208, %p209
      %p211 = pneg %p210
      // Predicated region
      $region25: #{tpu_custom_call.1} parent=5 // pred_check
        _
      $region26: #{tpu_custom_call.1} parent=5 // pred_check_branch
        %213 = sbr.rel (%p210) target = $region28
      $region27: #{tpu_custom_call.1} parent=5 // pred_region
        %s214 = ssub.s32 %s21, 1
        %s215 = sand.u32 %s34, 1
        %s216 = scalar_lea.sflag [#allocation3], %s215
        %s217 = sand.u32 %s34, 1
        %s218 = smul.addr %s217, 16
        %s219 = scalar_lea.vmem [#allocation2], %s218
        // Predicated region
        $region29: #{tpu_custom_call.1} parent=27 // pred_check
          %p220 = pneg %p47
        $region30: #{tpu_custom_call.1} parent=27 // pred_check_branch
          %222 = sbr.rel (%p220) target = $region32
        $region31: #{tpu_custom_call.1} parent=27 // pred_region
          %224 = dma.done %s216, 256
        $region32: #{tpu_custom_call.1} parent=27 // pred_fallthru
          _
        // Predicated region
        $region33: #{tpu_custom_call.1} parent=27 // pred_check
          %p225 = pneg %p68
        $region34: #{tpu_custom_call.1} parent=27 // pred_check_branch
          %227 = sbr.rel (%p225) target = $region36
        $region35: #{tpu_custom_call.1} parent=27 // pred_region
          %229 = dma.done [#allocation6], 512
        $region36: #{tpu_custom_call.1} parent=27 // pred_fallthru
          _
        %s230 = sand.u32 %s34, 1
        %s231 = scalar_lea.sflag [#allocation3], %s230
        %s232 = sand.u32 %s34, 1
        %s233 = smul.addr %s232, 16
        %s234 = scalar_lea.vmem [#allocation2], %s233
        %p235 = pneg %p47
        %p236 = pneg %p44
        %p237 = pneg %p68
        %p238 = pneg %p65
        %p239 = pneg %p94
        %p240 = pneg %p91
        %s241 = sand.u32 %s81, 1
        %s242 = sand.u32 %s81, 1
        %s243 = smul.addr %s242, 16
        %s244 = scalar_lea.vmem [#allocation7], %s243
        %p245 = pneg %p120
        %p246 = pneg %p117
        %s247 = sand.u32 %s107, 1
        %s248 = scalar_lea.sflag [#allocation4], %s247
        %s249 = sand.u32 %s107, 1
        %s250 = smul.addr %s249, 16
        %s251 = scalar_lea.vmem [#allocation8], %s250
        %p252 = pneg %p146
        %p253 = pneg %p143
        %s254 = sand.u32 %s133, 1
        %s255 = scalar_lea.sflag [#allocation10], %s254
        %s256 = sand.u32 %s133, 1
        %s257 = scalar_lea.vmem [#allocation9], %s256
        %s258 = smul.u32 2, %s26
        %s259 = ssub.s32 3, %s258
        %p260 = scmp.lt.s32.totalorder %s259, 2
        %s261 = scalar_select %p260, %s259, 2
        %s262 = smul.u32 8, %s261
        %s263 = smul.u32 2, %s26
        %s264 = ssub.s32 3, %s263
        %p265 = scmp.lt.s32.totalorder %s264, 2
        %s266 = scalar_select %p265, %s264, 2
        %s267 = smul.u32 8, %s266
        %s268 = smul.u32 2, %s26
        %s269 = ssub.s32 3, %s268
        %p270 = scmp.lt.s32.totalorder %s269, 2
        %s271 = scalar_select %p270, %s269, 2
        %s272 = smul.u32 8, %s271
        %v273 = vld [vmem:[%s219] sm:$0xff]
        %v274 = vld [vmem:[%s219 + $0x8] sm:$0xff]
        %v275 = vld [vmem:[#allocation5] sm:$0xff]
        %v276 = vld [vmem:[#allocation5 + $0x8] sm:$0xff]
        %v277 = vld [vmem:[#allocation5 + $0x10] sm:$0xff]
        %v278 = vld [vmem:[#allocation5 + $0x18] sm:$0xff]
        %vm279 = vcmask 261120
        %v281 = vsel %vm279, %v273, 0
        %v284 = vsel %vm279, %v274, 0
        %286 = vmatpush.msra.mxu0 0.0
        %287 = vmatpush.msra.mxu0 0.0
        %288 = vmatpush.msra.mxu0 0.0
        %289 = vmatpush.msra.mxu0 0.0
        %290 = vmatpush.msra.mxu0 0.0
        %291 = vmatpush.msra.mxu0 0.0
        %292 = vmatpush.msra.mxu0 0.0
        %293 = vmatpush.msra.mxu0 0.0
        %294 = vmatpush.msra.mxu0 0.0
        %295 = vmatpush.msra.mxu0 0.0
        %296 = vmatpush.msra.mxu0 0.0
        %297 = vmatpush.msra.mxu0 0.0
        %298 = vmatpush.msra.mxu0 %v278
        %299 = vmatpush.msra.mxu0 %v277
        %300 = vmatpush.msra.mxu0 %v276
        %301 = vmatpush.msra.mxu0 %v275
        %302 = vmatmul.f32.gmra.mxu0 %v281
        %v303 = vpop.f32.mrf.mxu0
        %v304 = vadd.f32 0.0, %v303
        %305 = vmatmul.f32.gmra.mxu0 %v284
        %v306 = vpop.f32.mrf.mxu0
        %v307 = vadd.f32 0.0, %v306
        %308 = vdwg.mxu0
        %vm309 = vcmask 64512
        %310 = vst.msk [vmem:[%s244] sm:$0xff] %vm309, %v304
        %311 = vst.msk [vmem:[%s244 + $0x8] sm:$0xff] %vm309, %v307
        %v312 = vlaneseq
        %v313 = vand.u32 %v312, 127
        %v314 = vlaneseq
        %v315 = vshrl.u32 %v314, 7
        %v316 = vadd.s32 %v315, 8
        %s317 = smul.u32 %s26, 16
        %v318 = vstv %s317
        %v319 = vadd.s32 %v318, %v315
        %v320 = vadd.s32 %v318, %v316
        %vm321 = vcmp.lt.s32.totalorder %v319, 20
        %vm322 = vcmp.lt.s32.totalorder %v320, 20
        %vm323 = vcmp.lt.s32.totalorder %v313, 8
        %v324 = vsel %vm323, %v304, -inf
        %v325 = vsel %vm323, %v307, -inf
        %326 = vmax.xlane.f32.xlu0 %v324
        %v327 = vpop.xlane.xlu0 %326
        %328 = vmax.xlane.f32.xlu0 %v325
        %v329 = vpop.xlane.xlu0 %328
        %vm330 = vcmp.eq.f32.partialorder %v324, %v327
        %vm331 = vcmp.eq.f32.partialorder %v325, %v329
        %v332 = vsel %vm330, %v313, 128
        %v333 = vsel %vm331, %v313, 128
        %v334 = vand.u32 %v332, 65535
        %v335 = vshra.s32 %v332, 16
        %v336 = vcvt.s32.f32 %v334
        %v337 = vcvt.s32.f32 %v335
        %338 = vmin.xlane.f32.xlu0 %v337
        %v339 = vpop.xlane.xlu0 %338
        %vm340 = vcmp.eq.f32.partialorder %v337, %v339
        %v341 = vsel %vm340, %v336, inf
        %342 = vmin.xlane.f32.xlu0 %v341
        %v343 = vpop.xlane.xlu0 %342
        %v344 = vcvt.f32.s32 %v343
        %v345 = vcvt.f32.s32 %v339
        %v346 = vshll.u32 %v345, 16
        %v347 = vadd.s32 %v346, %v344
        %v348 = vand.u32 %v333, 65535
        %v349 = vshra.s32 %v333, 16
        %v350 = vcvt.s32.f32 %v348
        %v351 = vcvt.s32.f32 %v349
        %352 = vmin.xlane.f32.xlu0 %v351
        %v353 = vpop.xlane.xlu0 %352
        %vm354 = vcmp.eq.f32.partialorder %v351, %v353
        %v355 = vsel %vm354, %v350, inf
        %356 = vmin.xlane.f32.xlu0 %v355
        %v357 = vpop.xlane.xlu0 %356
        %v358 = vcvt.f32.s32 %v357
        %v359 = vcvt.f32.s32 %v353
        %v360 = vshll.u32 %v359, 16
        %v361 = vadd.s32 %v360, %v358
        %vm362 = vcmp.eq.s32.totalorder %v313, %v347
        %vm363 = vcmp.eq.s32.totalorder %v313, %v361
        %v364 = vsel %vm362, 1, 0
        %v365 = vsel %vm363, 1, 0
        %v366 = vsel %vm362, -inf, %v324
        %v367 = vsel %vm363, -inf, %v325
        %368 = vmax.xlane.f32.xlu0 %v366
        %v369 = vpop.xlane.xlu0 %368
        %370 = vmax.xlane.f32.xlu0 %v367
        %v371 = vpop.xlane.xlu0 %370
        %vm372 = vcmp.eq.f32.partialorder %v366, %v369
        %vm373 = vcmp.eq.f32.partialorder %v367, %v371
        %v374 = vsel %vm372, %v313, 128
        %v375 = vsel %vm373, %v313, 128
        %v376 = vand.u32 %v374, 65535
        %v377 = vshra.s32 %v374, 16
        %v378 = vcvt.s32.f32 %v376
        %v379 = vcvt.s32.f32 %v377
        %380 = vmin.xlane.f32.xlu0 %v379
        %v381 = vpop.xlane.xlu0 %380
        %vm382 = vcmp.eq.f32.partialorder %v379, %v381
        %v383 = vsel %vm382, %v378, inf
        %384 = vmin.xlane.f32.xlu0 %v383
        %v385 = vpop.xlane.xlu0 %384
        %v386 = vcvt.f32.s32 %v385
        %v387 = vcvt.f32.s32 %v381
        %v388 = vshll.u32 %v387, 16
        %v389 = vadd.s32 %v388, %v386
        %v390 = vand.u32 %v375, 65535
        %v391 = vshra.s32 %v375, 16
        %v392 = vcvt.s32.f32 %v390
        %v393 = vcvt.s32.f32 %v391
        %394 = vmin.xlane.f32.xlu0 %v393
        %v395 = vpop.xlane.xlu0 %394
        %vm396 = vcmp.eq.f32.partialorder %v393, %v395
        %v397 = vsel %vm396, %v392, inf
        %398 = vmin.xlane.f32.xlu0 %v397
        %v399 = vpop.xlane.xlu0 %398
        %v400 = vcvt.f32.s32 %v399
        %v401 = vcvt.f32.s32 %v395
        %v402 = vshll.u32 %v401, 16
        %v403 = vadd.s32 %v402, %v400
        %vm404 = vcmp.eq.s32.totalorder %v313, %v389
        %vm405 = vcmp.eq.s32.totalorder %v313, %v403
        %v406 = vsel %vm404, 1, 0
        %v407 = vsel %vm405, 1, 0
        %v408 = vadd.s32 %v364, %v406
        %v409 = vadd.s32 %v365, %v407
        %v410 = vsel %vm321, 1, 0
        %v411 = vsel %vm322, 1, 0
        %vm412 = vcmp.eq.s32.totalorder %v410, 1
        %vm413 = vcmp.eq.s32.totalorder %v411, 1
        %v414 = vsel %vm412, %v408, 0
        %v415 = vsel %vm413, %v409, 0
        %v416 = vadd.s32 %v414, %v415
        %v417 = vrot.slane %v416, 4
        %v418 = vadd.s32 %v416, %v417
        %v419 = vrot.slane %v418, 2
        %v420 = vadd.s32 %v418, %v419
        %v421 = vrot.slane %v420, 1
        %v422 = vadd.s32 %v420, %v421
        %423 = vst [vmem:[%s257] sm:$0x1] %v422
        %v424 = vsub.f32 %v327, %v327
        %v425 = vsub.f32 %v329, %v329
        %v426 = vmul.f32 %v424, 1.442695
        %v427 = vpow.pop %v426
        %v428 = vmul.f32 %v425, 1.442695
        %v429 = vpow.pop %v428
        %v430 = vsub.f32 %v369, %v327
        %v431 = vsub.f32 %v371, %v329
        %v432 = vmul.f32 %v430, 1.442695
        %v433 = vpow.pop %v432
        %v434 = vmul.f32 %v431, 1.442695
        %v435 = vpow.pop %v434
        %v436 = vadd.f32 %v427, %v433
        %v437 = vadd.f32 %v429, %v435
        %v438 = vrcp.pop %v436
        %v439 = vmul.f32 %v436, %v438
        %v440 = vsub.f32 1.0, %v439
        %v441 = vmul.f32 %v438, %v440
        %v442 = vadd.f32 %v438, %v441
        %vm443 = vweird.f32 %v436
        %vm444 = vweird.f32 %v438
        %vm445 = vmor %vm443, %vm444
        %v446 = vsel %vm445, %v438, %v442
        %v447 = vand.u32 2147483647, %v436
        %vm448 = vcmp.eq.f32.partialorder %v447, 8.507059e+37
        %v449 = vand.u32 %v436, 2147483648
        %v450 = vor.u32 1.1754944e-38, %v449
        %v451 = vsel %vm448, %v450, %v446
        %v452 = vmul.f32 1.0, %v451
        %v453 = vrcp.pop %v437
        %v454 = vmul.f32 %v437, %v453
        %v455 = vsub.f32 1.0, %v454
        %v456 = vmul.f32 %v453, %v455
        %v457 = vadd.f32 %v453, %v456
        %vm458 = vweird.f32 %v437
        %vm459 = vweird.f32 %v453
        %vm460 = vmor %vm458, %vm459
        %v461 = vsel %vm460, %v453, %v457
        %v462 = vand.u32 2147483647, %v437
        %vm463 = vcmp.eq.f32.partialorder %v462, 8.507059e+37
        %v464 = vand.u32 %v437, 2147483648
        %v465 = vor.u32 1.1754944e-38, %v464
        %v466 = vsel %vm463, %v465, %v461
        %v467 = vmul.f32 1.0, %v466
        %vm468 = vcmp.eq.s32.totalorder %v313, 0
        %v469 = vmul.f32 %v427, %v452
        %v470 = vmul.f32 %v429, %v467
        %v471 = vsel %vm468, %v469, 0.0
        %v472 = vsel %vm468, %v470, 0.0
        %vm473 = vcmp.eq.s32.totalorder %v313, 2
        %v474 = vcvt.s32.f32 %v347
        %v475 = vcvt.s32.f32 %v361
        %v476 = vsel %vm473, %v474, %v471
        %v477 = vsel %vm473, %v475, %v472
        %vm478 = vcmp.eq.s32.totalorder %v313, 1
        %v479 = vmul.f32 %v433, %v452
        %v480 = vmul.f32 %v435, %v467
        %v481 = vsel %vm478, %v479, %v476
        %v482 = vsel %vm478, %v480, %v477
        %vm483 = vcmp.eq.s32.totalorder %v313, 3
        %v484 = vcvt.s32.f32 %v389
        %v485 = vcvt.s32.f32 %v403
        %v486 = vsel %vm483, %v484, %v481
        %v487 = vsel %vm483, %v485, %v482
        %488 = vst [vmem:[%s251] sm:$0xff] %v486
        %489 = vst [vmem:[%s251 + $0x8] sm:$0xff] %v487
        %s490 = sand.u32 %s81, 1
        %s491 = sand.u32 %s81, 1
        %s492 = smul.addr %s491, 16
        %s493 = scalar_lea.vmem [#allocation7], %s492
        %s494 = sand.u32 %s107, 1
        %s495 = scalar_lea.sflag [#allocation4], %s494
        %s496 = sand.u32 %s107, 1
        %s497 = smul.addr %s496, 16
        %s498 = scalar_lea.vmem [#allocation8], %s497
        %s499 = sand.u32 %s133, 1
        %s500 = scalar_lea.sflag [#allocation10], %s499
        %s501 = sand.u32 %s133, 1
        %s502 = scalar_lea.vmem [#allocation9], %s501
        // Predicated region
        $region37: #{tpu_custom_call.1} parent=27 // pred_check
          %p503 = pneg %p91
        $region38: #{tpu_custom_call.1} parent=27 // pred_check_branch
          %505 = sbr.rel (%p503) target = $region40
        $region39: #{tpu_custom_call.1} parent=27 // pred_region
          %s506 = smul.u32 2, %s26
          %s507 = ssub.s32 3, %s506
          %p508 = scmp.lt.s32.totalorder %s507, 2
          %s509 = scalar_select %p508, %s507, 2
          %s510 = smul.u32 8, %s509
          %p511 = scmp.ne.s32.totalorder 0, %s510
          %s512 = smul.addr %s506, 8
          %s513 = scalar_lea.vmem %s2, %s512
          // Predicated region
          $region41: #{tpu_custom_call.1} parent=39 // pred_check
            %p514 = pneg %p511
          $region42: #{tpu_custom_call.1} parent=39 // pred_check_branch
            %516 = sbr.rel (%p514) target = $region44
          $region43: #{tpu_custom_call.1} parent=39 // pred_region
            // Predicated region
            $region45: #{tpu_custom_call.1} parent=43 // pred_check
              _
            $region46: #{tpu_custom_call.1} parent=43 // pred_check_branch
              %518 = sbr.rel (0) target = $region48
            $region47: #{tpu_custom_call.1} parent=43 // pred_region
              // Predicated region
              $region67: #{tpu_custom_call.1} parent=47 // pred_check
                _
              $region68: #{tpu_custom_call.1} parent=47 // pred_check_branch
                %570 = sbr.rel (0) target = $region70
              $region69: #{tpu_custom_call.1} parent=47 // pred_region
                %s571 = sshrl.u32 %s509, 1
                // While loop
                $region71: #{tpu_custom_call.1} parent=69 // loop_pre_header
                  _
                $region72: #{tpu_custom_call.1} parent=69 // loop_header
                  %s573 = sphi 0, %s575
                  %p574 = scmp.ge.s32.totalorder %s573, %s571
                  %s578 = sphi 0, %s587
                  %s579 = sphi %s493, %s590
                  %s580 = sphi %s513, %s591
                $region73: #{tpu_custom_call.1} parent=69 // loop_header_branch
                  %577 = sbr.rel (%p574) target = $region77
                $region74: #{tpu_custom_call.1} parent=69 // loop_body
                  %v581 = vld [vmem:[%s579] sm:$0xff]
                  %582 = vst [vmem:[%s580] sm:$0xff] %v581
                  %v583 = vld [vmem:[%s579 + $0x8] sm:$0xff]
                  %584 = vst [vmem:[%s580 + $0x8] sm:$0xff] %v583
                  %s585 = sadd.s32 1, %s578
                  %p586 = scmp.ge.s32.totalorder %s585, %s571
                  %s587 = scalar_select %p586, 0, %s585
                  %s588 = smul.u32 %s587, 16
                  %s589 = smul.u32 %s587, 16
                  %s590 = scalar_lea.vmem %s493, %s588 [#allocation7]
                  %s591 = scalar_lea.vmem %s513, %s589
                $region75: #{tpu_custom_call.1} parent=69 // loop_footer
                  %s575 = sadd.s32 %s573, 1
                $region76: #{tpu_custom_call.1} parent=69 // loop_footer_branch
                  %572 = sbr.rel target = $region72
                $region77: #{tpu_custom_call.1} parent=69 // loop_exit
                  _
                %s592 = sshrl.u32 %s509, 1
                %s593 = sand.u32 %s509, 1
                %s594 = smul.u32 %s592, 2
                %s595 = smul.u32 8, %s594
                %s596 = scalar_lea.vmem %s493, %s595 [#allocation7]
                %s597 = smul.u32 8, %s594
                %s598 = scalar_lea.vmem %s513, %s597
                // While loop
                $region78: #{tpu_custom_call.1} parent=69 // loop_pre_header
                  _
                $region79: #{tpu_custom_call.1} parent=69 // loop_header
                  %s600 = sphi 0, %s602
                  %p601 = scmp.ge.s32.totalorder %s600, %s593
                  %s605 = sphi 0, %s612
                  %s606 = sphi %s596, %s615
                  %s607 = sphi %s598, %s616
                $region80: #{tpu_custom_call.1} parent=69 // loop_header_branch
                  %604 = sbr.rel (%p601) target = $region84
                $region81: #{tpu_custom_call.1} parent=69 // loop_body
                  %v608 = vld [vmem:[%s606] sm:$0xff]
                  %609 = vst [vmem:[%s607] sm:$0xff] %v608
                  %s610 = sadd.s32 1, %s605
                  %p611 = scmp.ge.s32.totalorder %s610, %s593
                  %s612 = scalar_select %p611, 0, %s610
                  %s613 = smul.u32 %s612, 8
                  %s614 = smul.u32 %s612, 8
                  %s615 = scalar_lea.vmem %s596, %s613 [#allocation7]
                  %s616 = scalar_lea.vmem %s598, %s614
                $region82: #{tpu_custom_call.1} parent=69 // loop_footer
                  %s602 = sadd.s32 %s600, 1
                $region83: #{tpu_custom_call.1} parent=69 // loop_footer_branch
                  %599 = sbr.rel target = $region79
                $region84: #{tpu_custom_call.1} parent=69 // loop_exit
                  _
              $region70: #{tpu_custom_call.1} parent=47 // pred_fallthru
                _
              // Predicated region
              $region85: #{tpu_custom_call.1} parent=47 // pred_check
                _
              $region86: #{tpu_custom_call.1} parent=47 // pred_check_branch
                %618 = sbr.rel target = $region88
              $region87: #{tpu_custom_call.1} parent=47 // pred_region
                _
              $region88: #{tpu_custom_call.1} parent=47 // pred_fallthru
                _
            $region48: #{tpu_custom_call.1} parent=43 // pred_fallthru
              _
            // Predicated region
            $region49: #{tpu_custom_call.1} parent=43 // pred_check
              _
            $region50: #{tpu_custom_call.1} parent=43 // pred_check_branch
              %520 = sbr.rel target = $region52
            $region51: #{tpu_custom_call.1} parent=43 // pred_region
              %s522 = ssub.s32 256, 1
              %s523 = sshrl.u32 %s509, 1
              // While loop
              $region53: #{tpu_custom_call.1} parent=51 // loop_pre_header
                _
              $region54: #{tpu_custom_call.1} parent=51 // loop_header
                %s525 = sphi 0, %s527
                %p526 = scmp.ge.s32.totalorder %s525, %s523
                %s530 = sphi 0, %s539
                %s531 = sphi %s493, %s542
                %s532 = sphi %s513, %s543
              $region55: #{tpu_custom_call.1} parent=51 // loop_header_branch
                %529 = sbr.rel (%p526) target = $region59
              $region56: #{tpu_custom_call.1} parent=51 // loop_body
                %v533 = vld [vmem:[%s531] sm:%s522]
                %534 = vst [vmem:[%s532] sm:%s522] %v533
                %v535 = vld [vmem:[%s531 + $0x8] sm:%s522]
                %536 = vst [vmem:[%s532 + $0x8] sm:%s522] %v535
                %s537 = sadd.s32 1, %s530
                %p538 = scmp.ge.s32.totalorder %s537, %s523
                %s539 = scalar_select %p538, 0, %s537
                %s540 = smul.u32 %s539, 16
                %s541 = smul.u32 %s539, 16
                %s542 = scalar_lea.vmem %s493, %s540 [#allocation7]
                %s543 = scalar_lea.vmem %s513, %s541
              $region57: #{tpu_custom_call.1} parent=51 // loop_footer
                %s527 = sadd.s32 %s525, 1
              $region58: #{tpu_custom_call.1} parent=51 // loop_footer_branch
                %524 = sbr.rel target = $region54
              $region59: #{tpu_custom_call.1} parent=51 // loop_exit
                _
              %s544 = sshrl.u32 %s509, 1
              %s545 = sand.u32 %s509, 1
              %s546 = smul.u32 %s544, 2
              %s547 = smul.u32 8, %s546
              %s548 = scalar_lea.vmem %s493, %s547 [#allocation7]
              %s549 = smul.u32 8, %s546
              %s550 = scalar_lea.vmem %s513, %s549
              // While loop
              $region60: #{tpu_custom_call.1} parent=51 // loop_pre_header
                _
              $region61: #{tpu_custom_call.1} parent=51 // loop_header
                %s552 = sphi 0, %s554
                %p553 = scmp.ge.s32.totalorder %s552, %s545
                %s557 = sphi 0, %s564
                %s558 = sphi %s548, %s567
                %s559 = sphi %s550, %s568
              $region62: #{tpu_custom_call.1} parent=51 // loop_header_branch
                %556 = sbr.rel (%p553) target = $region66
              $region63: #{tpu_custom_call.1} parent=51 // loop_body
                %v560 = vld [vmem:[%s558] sm:%s522]
                %561 = vst [vmem:[%s559] sm:%s522] %v560
                %s562 = sadd.s32 1, %s557
                %p563 = scmp.ge.s32.totalorder %s562, %s545
                %s564 = scalar_select %p563, 0, %s562
                %s565 = smul.u32 %s564, 8
                %s566 = smul.u32 %s564, 8
                %s567 = scalar_lea.vmem %s548, %s565 [#allocation7]
                %s568 = scalar_lea.vmem %s550, %s566
              $region64: #{tpu_custom_call.1} parent=51 // loop_footer
                %s554 = sadd.s32 %s552, 1
              $region65: #{tpu_custom_call.1} parent=51 // loop_footer_branch
                %551 = sbr.rel target = $region61
              $region66: #{tpu_custom_call.1} parent=51 // loop_exit
                _
            $region52: #{tpu_custom_call.1} parent=43 // pred_fallthru
              _
          $region44: #{tpu_custom_call.1} parent=39 // pred_fallthru
            _
          %619 = vnop
        $region40: #{tpu_custom_call.1} parent=27 // pred_fallthru
          _
        // Predicated region
        $region89: #{tpu_custom_call.1} parent=27 // pred_check
          %p620 = pneg %p117
        $region90: #{tpu_custom_call.1} parent=27 // pred_check_branch
          %622 = sbr.rel (%p620) target = $region92
        $region91: #{tpu_custom_call.1} parent=27 // pred_region
          %s623 = smul.u32 2, %s26
          %s624 = ssub.s32 3, %s623
          %p625 = scmp.lt.s32.totalorder %s624, 2
          %s626 = scalar_select %p625, %s624, 2
          %s627 = smul.u32 8, %s626
          %s628 = ssub.s32 16, %s627
          %s629 = sshll.u32 %s628, 4
          %630 = vsyncadd %s495, %s629
          %p631 = scmp.ne.s32.totalorder 0, %s627
          %s632 = smul.addr %s623, 8
          %s633 = scalar_lea.hbm %s3, %s632
          %s634 = smul.u32 8, %s626
          %s635 = sshll.u32 %s498, 4
          %s636 = int_to_ptr.vmem [resolvable:$true] %s635
          %s637 = sshll.u32 %s633, 4
          %s638 = int_to_ptr.hbm [resolvable:$true] %s637
          %s639 = sshll.u32 %s634, 4
          %643 = dma.vmem_to_hbm [thread:$0]  (%p631), %s636, %s639, %s638, %s495, 128, 128, 8
        $region92: #{tpu_custom_call.1} parent=27 // pred_fallthru
          _
        // Predicated region
        $region93: #{tpu_custom_call.1} parent=27 // pred_check
          %p644 = pneg %p143
        $region94: #{tpu_custom_call.1} parent=27 // pred_check_branch
          %646 = sbr.rel (%p644) target = $region96
        $region95: #{tpu_custom_call.1} parent=27 // pred_region
          %648 = vsyncadd %s500, 0
          %s649 = scalar_lea.hbm %s4, %s26
          %s651 = sshll.u32 %s502, 4
          %s652 = int_to_ptr.vmem [resolvable:$true] %s651
          %s653 = sshll.u32 %s649, 4
          %s654 = int_to_ptr.hbm [resolvable:$true] %s653
          %656 = dma.vmem_to_hbm [thread:$0]  %s652, 16, %s654, %s500
        $region96: #{tpu_custom_call.1} parent=27 // pred_fallthru
          _
      $region28: #{tpu_custom_call.1} parent=5 // pred_fallthru
        _
      %p657 = scmp.le.s32.totalorder 2, %s21
      // Predicated region
      $region97: #{tpu_custom_call.1} parent=5 // pred_check
        %p658 = pneg %p657
      $region98: #{tpu_custom_call.1} parent=5 // pred_check_branch
        %660 = sbr.rel (%p658) target = $region100
      $region99: #{tpu_custom_call.1} parent=5 // pred_region
        %s661 = ssub.s32 %s21, 2
        // Predicated region
        $region101: #{tpu_custom_call.1} parent=99 // pred_check
          %p662 = pneg %p97
        $region102: #{tpu_custom_call.1} parent=99 // pred_check_branch
          %664 = sbr.rel (%p662) target = $region104
        $region103: #{tpu_custom_call.1} parent=99 // pred_region
          %s665 = sand.u32 %s82, 1
          %s666 = sand.u32 %s82, 1
          %s667 = smul.addr %s666, 16
          %s668 = scalar_lea.vmem [#allocation7], %s667
        $region104: #{tpu_custom_call.1} parent=99 // pred_fallthru
          _
        // Predicated region
        $region105: #{tpu_custom_call.1} parent=99 // pred_check
          %p669 = pneg %p123
        $region106: #{tpu_custom_call.1} parent=99 // pred_check_branch
          %671 = sbr.rel (%p669) target = $region108
        $region107: #{tpu_custom_call.1} parent=99 // pred_region
          %s672 = sand.u32 %s108, 1
          %s673 = scalar_lea.sflag [#allocation4], %s672
          %s674 = sand.u32 %s108, 1
          %s675 = smul.addr %s674, 16
          %s676 = scalar_lea.vmem [#allocation8], %s675
          %678 = dma.done %s673, 256
        $region108: #{tpu_custom_call.1} parent=99 // pred_fallthru
          _
        // Predicated region
        $region109: #{tpu_custom_call.1} parent=99 // pred_check
          %p679 = pneg %p149
        $region110: #{tpu_custom_call.1} parent=99 // pred_check_branch
          %681 = sbr.rel (%p679) target = $region112
        $region111: #{tpu_custom_call.1} parent=99 // pred_region
          %s682 = sand.u32 %s134, 1
          %s683 = scalar_lea.sflag [#allocation10], %s682
          %s684 = sand.u32 %s134, 1
          %s685 = scalar_lea.vmem [#allocation9], %s684
          %687 = dma.done %s683, 16
        $region112: #{tpu_custom_call.1} parent=99 // pred_fallthru
          _
      $region100: #{tpu_custom_call.1} parent=5 // pred_fallthru
        _
    $region6: #{tpu_custom_call.1} parent=1 // loop_footer
      %s25 = sadd.s32 1, %s21
    $region7: #{tpu_custom_call.1} parent=1 // loop_footer_branch
      %20 = sbr.rel target = $region3
    $region8: #{tpu_custom_call.1} parent=1 // loop_exit
      _
    %688 = vsyncpa [#allocation3], 1
    %s689 = scalar_lea.sflag [#allocation3], 1
    %690 = vsyncpa %s689, 1
    %691 = vsyncpa [#allocation6], 1
    %692 = vsyncpa [#allocation4], 1
    %s693 = scalar_lea.sflag [#allocation4], 1
    %694 = vsyncpa %s693, 1
    %695 = vsyncpa [#allocation10], 1
    %s696 = scalar_lea.sflag [#allocation10], 1
    %697 = vsyncpa %s696, 1

// kernel: tpu_custom_call.1
$region0: #{tpu_custom_call.1}
  #allocation0 [shape = 'u32[]', space=smem, size = 0x4, offset = 0x4, fixed_abs, tag = 'smem constant byte address 0x4 - core index']
  #allocation1 [shape = 'u32[72,128]{1,0:T(1,128)}', space=vmem, size = 0x9000, scoped, tag = 'internal scratch']
  %s0 = inlined_call_operand.hbm [shape: f32[20,32], index: 0, kind: input, shape index: {}]
  %s1 = inlined_call_operand.hbm [shape: f32[32,128], index: 1, kind: input, shape index: {}]
  %s2 = inlined_call_operand.vmem [shape: f32[20,8], index: 2, kind: output, shape index: {0}]
  %s3 = inlined_call_operand.hbm [shape: f32[20,128], index: 3, kind: output, shape index: {1}]
  %s4 = inlined_call_operand.hbm [shape: s32[2,1,128], index: 4, kind: output, shape index: {2}]
  %5 = xla_tuple %s2, %s3, %s4
  %s6 = sld [smem:[#allocation0]]
  $region113: #{tpu_custom_call.1} parent=0
    _
  %s8 = ssub.s32 1, %s6
  %s9 = scalar_select 0, %s8, %s6
  $region1: #{tpu_custom_call.1} parent=0
    #allocation2 [shape = 'u8[16384]{0}', space=vmem, size = 0x4000, scoped, tag = 'input window, operand 0']
    #allocation3 [shape = 's32[2]{0}', space=sflag, size = 0x8, scoped, tag = 'scoped memory for tpu_custom_call.1']
    #allocation4 [shape = 's32[2]{0}', space=sflag, size = 0x8, scoped, tag = 'scoped memory for tpu_custom_call.1']
    #allocation5 [shape = 'u8[16384]{0}', space=vmem, size = 0x4000, scoped, tag = 'input window, operand 1, single buffered']
    #allocation6 [shape = 's32[1]{0}', space=sflag, size = 0x4, scoped, tag = 'scoped memory for tpu_custom_call.1']
    #allocation7 [shape = 'u8[16384]{0}', space=vmem, size = 0x4000, scoped, tag = 'output window, operand 0']
    #allocation8 [shape = 'u8[16384]{0}', space=vmem, size = 0x4000, scoped, tag = 'output window, operand 1']
    #allocation9 [shape = 'u8[1024]{0}', space=vmem, size = 0x400, scoped, tag = 'output window, operand 2']
    #allocation10 [shape = 's32[2]{0}', space=sflag, size = 0x8, scoped, tag = 'scoped memory for tpu_custom_call.1']
    %10 = vsyncpa [#allocation3], 0
    %s11 = scalar_lea.sflag [#allocation3], 1
    %12 = vsyncpa %s11, 0
    %13 = vsyncpa [#allocation6], 0
    %14 = vsyncpa [#allocation4], 0
    %s15 = scalar_lea.sflag [#allocation4], 1
    %16 = vsyncpa %s15, 0
    %17 = vsyncpa [#allocation10], 0
    %s18 = scalar_lea.sflag [#allocation10], 1
    %19 = vsyncpa %s18, 0
    loop: start=0, step=1, limit=4
    $region2: #{tpu_custom_call.1} parent=1 // loop_pre_header
      _
    $region3: #{tpu_custom_call.1} parent=1 // loop_header
      %s21 = sphi 0, %s25
      %p22 = scmp.ge.s32.totalorder %s21, 4
      %s31 = sphi 0, %s33
      %s34 = sphi 0, %s31
      %s35 = sphi 0, %s34
      %s51 = sphi 0, %s35
      %s55 = sphi 0, %s55
      %s57 = sphi 0, %s55
      %s58 = sphi 0, %s57
      %s72 = sphi 0, %s58
      %s78 = sphi 0, %s80
      %s81 = sphi 0, %s78
      %s82 = sphi 0, %s81
      %s98 = sphi 0, %s82
      %s104 = sphi 0, %s106
      %s107 = sphi 0, %s104
      %s108 = sphi 0, %s107
      %s124 = sphi 0, %s108
      %s130 = sphi 0, %s132
      %s133 = sphi 0, %s130
      %s134 = sphi 0, %s133
      %s150 = sphi 0, %s134
    $region4: #{tpu_custom_call.1} parent=1 // loop_header_branch
      %24 = sbr.rel (%p22) target = $region8
    $region5: #{tpu_custom_call.1} parent=1 // loop_body
      %s26 = ssub.s32 %s21, 1
      %s27 = ssub.s32 %s21, 2
      %s28 = sadd.s32 %s21, 1
      %s29 = ssub.s32 %s21, %s28
      %p30 = scmp.eq.s32.totalorder %s29, 0
      %s32 = sadd.s32 %s31, 1
      %s33 = scalar_select %p30, %s31, %s32
      %p36 = pneg %p30
      %p37 = scmp.eq.s32.totalorder %s21, 1
      %p38 = por %p36, %p37
      %p39 = scmp.ne.s32.totalorder %s31, %s34
      %p40 = scmp.eq.s32.totalorder %s21, 0
      %p41 = por %p39, %p40
      %p42 = scmp.ne.s32.totalorder %s31, %s34
      %p43 = scmp.eq.s32.totalorder %s26, 1
      %p44 = por %p42, %p43
      %p45 = scmp.ne.s32.totalorder %s34, %s35
      %p46 = scmp.eq.s32.totalorder %s26, 0
      %p47 = por %p45, %p46
      %p48 = scmp.ne.s32.totalorder %s34, %s35
      %p49 = scmp.eq.s32.totalorder %s27, 1
      %p50 = por %p48, %p49
      %p52 = scmp.ne.s32.totalorder %s35, %s51
      %p53 = scmp.eq.s32.totalorder %s27, 0
      %p54 = por %p52, %p53
      %s56 = sadd.s32 %s55, 1
      %p59 = scmp.eq.s32.totalorder %s21, 1
      %p60 = scmp.ne.s32.totalorder %s55, %s57
      %p61 = scmp.eq.s32.totalorder %s21, 0
      %p62 = por %p60, %p61
      %p63 = scmp.ne.s32.totalorder %s55, %s57
      %p64 = scmp.eq.s32.totalorder %s26, 1
      %p65 = por %p63, %p64
      %p66 = scmp.ne.s32.totalorder %s57, %s58
      %p67 = scmp.eq.s32.totalorder %s26, 0
      %p68 = por %p66, %p67
      %p69 = scmp.ne.s32.totalorder %s57, %s58
      %p70 = scmp.eq.s32.totalorder %s27, 1
      %p71 = por %p69, %p70
      %p73 = scmp.ne.s32.totalorder %s58, %s72
      %p74 = scmp.eq.s32.totalorder %s27, 0
      %p75 = por %p73, %p74
      %s76 = ssub.s32 %s21, %s28
      %p77 = scmp.eq.s32.totalorder %s76, 0
      %s79 = sadd.s32 %s78, 1
      %s80 = scalar_select %p77, %s78, %s79
      %p83 = pneg %p77
      %p84 = scmp.eq.s32.totalorder %s21, 1
      %p85 = por %p83, %p84
      %p86 = scmp.ne.s32.totalorder %s78, %s81
      %p87 = scmp.eq.s32.totalorder %s21, 0
      %p88 = por %p86, %p87
      %p89 = scmp.ne.s32.totalorder %s78, %s81
      %p90 = scmp.eq.s32.totalorder %s26, 1
      %p91 = por %p89, %p90
      %p92 = scmp.ne.s32.totalorder %s81, %s82
      %p93 = scmp.eq.s32.totalorder %s26, 0
      %p94 = por %p92, %p93
      %p95 = scmp.ne.s32.totalorder %s81, %s82
      %p96 = scmp.eq.s32.totalorder %s27, 1
      %p97 = por %p95, %p96
      %p99 = scmp.ne.s32.totalorder %s82, %s98
      %p100 = scmp.eq.s32.totalorder %s27, 0
      %p101 = por %p99, %p100
      %s102 = ssub.s32 %s21, %s28
      %p103 = scmp.eq.s32.totalorder %s102, 0
      %s105 = sadd.s32 %s104, 1
      %s106 = scalar_select %p103, %s104, %s105
      %p109 = pneg %p103
      %p110 = scmp.eq.s32.totalorder %s21, 1
      %p111 = por %p109, %p110
      %p112 = scmp.ne.s32.totalorder %s104, %s107
      %p113 = scmp.eq.s32.totalorder %s21, 0
      %p114 = por %p112, %p113
      %p115 = scmp.ne.s32.totalorder %s104, %s107
      %p116 = scmp.eq.s32.totalorder %s26, 1
      %p117 = por %p115, %p116
      %p118 = scmp.ne.s32.totalorder %s107, %s108
      %p119 = scmp.eq.s32.totalorder %s26, 0
      %p120 = por %p118, %p119
      %p121 = scmp.ne.s32.totalorder %s107, %s108
      %p122 = scmp.eq.s32.totalorder %s27, 1
      %p123 = por %p121, %p122
      %p125 = scmp.ne.s32.totalorder %s108, %s124
      %p126 = scmp.eq.s32.totalorder %s27, 0
      %p127 = por %p125, %p126
      %s128 = ssub.s32 %s21, %s28
      %p129 = scmp.eq.s32.totalorder %s128, 0
      %s131 = sadd.s32 %s130, 1
      %s132 = scalar_select %p129, %s130, %s131
      %p135 = pneg %p129
      %p136 = scmp.eq.s32.totalorder %s21, 1
      %p137 = por %p135, %p136
      %p138 = scmp.ne.s32.totalorder %s130, %s133
      %p139 = scmp.eq.s32.totalorder %s21, 0
      %p140 = por %p138, %p139
      %p141 = scmp.ne.s32.totalorder %s130, %s133
      %p142 = scmp.eq.s32.totalorder %s26, 1
      %p143 = por %p141, %p142
      %p144 = scmp.ne.s32.totalorder %s133, %s134
      %p145 = scmp.eq.s32.totalorder %s26, 0
      %p146 = por %p144, %p145
      %p147 = scmp.ne.s32.totalorder %s133, %s134
      %p148 = scmp.eq.s32.totalorder %s27, 1
      %p149 = por %p147, %p148
      %p151 = scmp.ne.s32.totalorder %s134, %s150
      %p152 = scmp.eq.s32.totalorder %s27, 0
      %p153 = por %p151, %p152
      %p154 = scmp.le.s32.totalorder 1, %s21
      %p155 = scmp.lt.s32.totalorder %s21, 3
      %p156 = pnand %p154, %p155
      %p157 = pneg %p156
      // Predicated region
      $region9: #{tpu_custom_call.1} parent=5 // pred_check
        _
      $region10: #{tpu_custom_call.1} parent=5 // pred_check_branch
        %159 = sbr.rel (%p156) target = $region12
      $region11: #{tpu_custom_call.1} parent=5 // pred_region
        %s160 = ssub.s32 %s21, 1
        // Predicated region
        $region13: #{tpu_custom_call.1} parent=11 // pred_check
          %p161 = pneg %p68
        $region14: #{tpu_custom_call.1} parent=11 // pred_check_branch
          %163 = sbr.rel (%p161) target = $region16
        $region15: #{tpu_custom_call.1} parent=11 // pred_region
          %165 = vsyncadd [#allocation6], 0
          %s166 = sshll.u32 %s1, 4
          %s167 = int_to_ptr.hbm [resolvable:$true] %s166
          %s168 = sshll.u32 [#allocation5], 4
          %s169 = int_to_ptr.vmem [resolvable:$true] %s168
          %174 = dma.hbm_to_vmem [thread:$0]  %s167, 512, %s169, [#allocation6], 128, 128, 8
        $region16: #{tpu_custom_call.1} parent=11 // pred_fallthru
          _
      $region12: #{tpu_custom_call.1} parent=5 // pred_fallthru
        _
      %p175 = scmp.lt.s32.totalorder %s21, 2
      // Predicated region
      $region17: #{tpu_custom_call.1} parent=5 // pred_check
        %p176 = pneg %p175
      $region18: #{tpu_custom_call.1} parent=5 // pred_check_branch
        %178 = sbr.rel (%p176) target = $region20
      $region19: #{tpu_custom_call.1} parent=5 // pred_region
        // Predicated region
        $region21: #{tpu_custom_call.1} parent=19 // pred_check
          %p179 = pneg %p41
        $region22: #{tpu_custom_call.1} parent=19 // pred_check_branch
          %181 = sbr.rel (%p179) target = $region24
        $region23: #{tpu_custom_call.1} parent=19 // pred_region
          %s182 = sand.u32 %s31, 1
          %s183 = scalar_lea.sflag [#allocation3], %s182
          %s184 = sand.u32 %s31, 1
          %s185 = smul.addr %s184, 16
          %s186 = scalar_lea.vmem [#allocation2], %s185
          %s187 = smul.u32 2, %s21
          %s188 = ssub.s32 3, %s187
          %p189 = scmp.lt.s32.totalorder %s188, 2
          %s190 = scalar_select %p189, %s188, 2
          %s191 = smul.u32 8, %s190
          %s192 = ssub.s32 16, %s191
          %s193 = sshll.u32 %s192, 4
          %194 = vsyncadd %s183, %s193
          %p195 = scmp.ne.s32.totalorder 0, %s191
          %s196 = smul.addr %s187, 8
          %s197 = scalar_lea.hbm %s0, %s196
          %s198 = smul.u32 8, %s190
          %s199 = sshll.u32 %s197, 4
          %s200 = int_to_ptr.hbm [resolvable:$true] %s199
          %s201 = sshll.u32 %s186, 4
          %s202 = int_to_ptr.vmem [resolvable:$true] %s201
          %s203 = sshll.u32 %s198, 4
          %207 = dma.hbm_to_vmem [thread:$0]  (%p195), %s200, %s203, %s202, %s183, 128, 128, 8
        $region24: #{tpu_custom_call.1} parent=19 // pred_fallthru
          _
      $region20: #{tpu_custom_call.1} parent=5 // pred_fallthru
        _
      %p208 = scmp.le.s32.totalorder 1, %s21
      %p209 = scmp.lt.s32.totalorder %s21, 3
      %p210 = pnand %p208, %p209
      %p211 = pneg %p210
      // Predicated region
      $region25: #{tpu_custom_call.1} parent=5 // pred_check
        _
      $region26: #{tpu_custom_call.1} parent=5 // pred_check_branch
        %213 = sbr.rel (%p210) target = $region28
      $region27: #{tpu_custom_call.1} parent=5 // pred_region
        %s214 = ssub.s32 %s21, 1
        %s215 = sand.u32 %s34, 1
        %s216 = scalar_lea.sflag [#allocation3], %s215
        %s217 = sand.u32 %s34, 1
        %s218 = smul.addr %s217, 16
        %s219 = scalar_lea.vmem [#allocation2], %s218
        // Predicated region
        $region29: #{tpu_custom_call.1} parent=27 // pred_check
          %p220 = pneg %p47
        $region30: #{tpu_custom_call.1} parent=27 // pred_check_branch
          %222 = sbr.rel (%p220) target = $region32
        $region31: #{tpu_custom_call.1} parent=27 // pred_region
          %224 = dma.done %s216, 256
        $region32: #{tpu_custom_call.1} parent=27 // pred_fallthru
          _
        // Predicated region
        $region33: #{tpu_custom_call.1} parent=27 // pred_check
          %p225 = pneg %p68
        $region34: #{tpu_custom_call.1} parent=27 // pred_check_branch
          %227 = sbr.rel (%p225) target = $region36
        $region35: #{tpu_custom_call.1} parent=27 // pred_region
          %229 = dma.done [#allocation6], 512
        $region36: #{tpu_custom_call.1} parent=27 // pred_fallthru
          _
        %s230 = sand.u32 %s34, 1
        %s231 = scalar_lea.sflag [#allocation3], %s230
        %s232 = sand.u32 %s34, 1
        %s233 = smul.addr %s232, 16
        %s234 = scalar_lea.vmem [#allocation2], %s233
        %p235 = pneg %p47
        %p236 = pneg %p44
        %p237 = pneg %p68
        %p238 = pneg %p65
        %p239 = pneg %p94
        %p240 = pneg %p91
        %s241 = sand.u32 %s81, 1
        %s242 = sand.u32 %s81, 1
        %s243 = smul.addr %s242, 16
        %s244 = scalar_lea.vmem [#allocation7], %s243
        %p245 = pneg %p120
        %p246 = pneg %p117
        %s247 = sand.u32 %s107, 1
        %s248 = scalar_lea.sflag [#allocation4], %s247
        %s249 = sand.u32 %s107, 1
        %s250 = smul.addr %s249, 16
        %s251 = scalar_lea.vmem [#allocation8], %s250
        %p252 = pneg %p146
        %p253 = pneg %p143
        %s254 = sand.u32 %s133, 1
        %s255 = scalar_lea.sflag [#allocation10], %s254
        %s256 = sand.u32 %s133, 1
        %s257 = scalar_lea.vmem [#allocation9], %s256
        %s258 = smul.u32 2, %s26
        %s259 = ssub.s32 3, %s258
        %p260 = scmp.lt.s32.totalorder %s259, 2
        %s261 = scalar_select %p260, %s259, 2
        %s262 = smul.u32 8, %s261
        %s263 = smul.u32 2, %s26
        %s264 = ssub.s32 3, %s263
        %p265 = scmp.lt.s32.totalorder %s264, 2
        %s266 = scalar_select %p265, %s264, 2
        %s267 = smul.u32 8, %s266
        %s268 = smul.u32 2, %s26
        %s269 = ssub.s32 3, %s268
        %p270 = scmp.lt.s32.totalorder %s269, 2
        %s271 = scalar_select %p270, %s269, 2
        %s272 = smul.u32 8, %s271
        %v273 = vld [vmem:[%s219] sm:$0xff]
        %v274 = vld [vmem:[%s219 + $0x8] sm:$0xff]
        %v275 = vld [vmem:[#allocation5] sm:$0xff]
        %v276 = vld [vmem:[#allocation5 + $0x8] sm:$0xff]
        %v277 = vld [vmem:[#allocation5 + $0x10] sm:$0xff]
        %v278 = vld [vmem:[#allocation5 + $0x18] sm:$0xff]
        %vm279 = vcmask 261120
        %v281 = vsel %vm279, %v273, 0
        %v284 = vsel %vm279, %v274, 0
        %286 = vmatpush.msra.mxu0 0.0
        %287 = vmatpush.msra.mxu0 0.0
        %288 = vmatpush.msra.mxu0 0.0
        %289 = vmatpush.msra.mxu0 0.0
        %290 = vmatpush.msra.mxu0 0.0
        %291 = vmatpush.msra.mxu0 0.0
        %292 = vmatpush.msra.mxu0 0.0
        %293 = vmatpush.msra.mxu0 0.0
        %294 = vmatpush.msra.mxu0 0.0
        %295 = vmatpush.msra.mxu0 0.0
        %296 = vmatpush.msra.mxu0 0.0
        %297 = vmatpush.msra.mxu0 0.0
        %298 = vmatpush.msra.mxu0 %v278
        %299 = vmatpush.msra.mxu0 %v277
        %300 = vmatpush.msra.mxu0 %v276
        %301 = vmatpush.msra.mxu0 %v275
        %302 = vmatmul.f32.gmra.mxu0 %v281
        %v303 = vpop.f32.mrf.mxu0
        %v304 = vadd.f32 0.0, %v303
        %305 = vmatmul.f32.gmra.mxu0 %v284
        %v306 = vpop.f32.mrf.mxu0
        %v307 = vadd.f32 0.0, %v306
        %308 = vdwg.mxu0
        %vm309 = vcmask 64512
        %310 = vst.msk [vmem:[%s244] sm:$0xff] %vm309, %v304
        %311 = vst.msk [vmem:[%s244 + $0x8] sm:$0xff] %vm309, %v307
        %v312 = vlaneseq
        %v313 = vand.u32 %v312, 127
        %v314 = vlaneseq
        %v315 = vshrl.u32 %v314, 7
        %v316 = vadd.s32 %v315, 8
        %s317 = smul.u32 %s26, 16
        %v318 = vstv %s317
        %v319 = vadd.s32 %v318, %v315
        %v320 = vadd.s32 %v318, %v316
        %vm321 = vcmp.lt.s32.totalorder %v319, 20
        %vm322 = vcmp.lt.s32.totalorder %v320, 20
        %vm323 = vcmp.lt.s32.totalorder %v313, 8
        %v324 = vsel %vm323, %v304, -inf
        %v325 = vsel %vm323, %v307, -inf
        %326 = vmax.xlane.f32.xlu0 %v324
        %v327 = vpop.xlane.xlu0 %326
        %328 = vmax.xlane.f32.xlu0 %v325
        %v329 = vpop.xlane.xlu0 %328
        %vm330 = vcmp.eq.f32.partialorder %v324, %v327
        %vm331 = vcmp.eq.f32.partialorder %v325, %v329
        %v332 = vsel %vm330, %v313, 128
        %v333 = vsel %vm331, %v313, 128
        %v334 = vand.u32 %v332, 65535
        %v335 = vshra.s32 %v332, 16
        %v336 = vcvt.s32.f32 %v334
        %v337 = vcvt.s32.f32 %v335
        %338 = vmin.xlane.f32.xlu0 %v337
        %v339 = vpop.xlane.xlu0 %338
        %vm340 = vcmp.eq.f32.partialorder %v337, %v339
        %v341 = vsel %vm340, %v336, inf
        %342 = vmin.xlane.f32.xlu0 %v341
        %v343 = vpop.xlane.xlu0 %342
        %v344 = vcvt.f32.s32 %v343
        %v345 = vcvt.f32.s32 %v339
        %v346 = vshll.u32 %v345, 16
        %v347 = vadd.s32 %v346, %v344
        %v348 = vand.u32 %v333, 65535
        %v349 = vshra.s32 %v333, 16
        %v350 = vcvt.s32.f32 %v348
        %v351 = vcvt.s32.f32 %v349
        %352 = vmin.xlane.f32.xlu0 %v351
        %v353 = vpop.xlane.xlu0 %352
        %vm354 = vcmp.eq.f32.partialorder %v351, %v353
        %v355 = vsel %vm354, %v350, inf
        %356 = vmin.xlane.f32.xlu0 %v355
        %v357 = vpop.xlane.xlu0 %356
        %v358 = vcvt.f32.s32 %v357
        %v359 = vcvt.f32.s32 %v353
        %v360 = vshll.u32 %v359, 16
        %v361 = vadd.s32 %v360, %v358
        %vm362 = vcmp.eq.s32.totalorder %v313, %v347
        %vm363 = vcmp.eq.s32.totalorder %v313, %v361
        %v364 = vsel %vm362, 1, 0
        %v365 = vsel %vm363, 1, 0
        %v366 = vsel %vm362, -inf, %v324
        %v367 = vsel %vm363, -inf, %v325
        %368 = vmax.xlane.f32.xlu0 %v366
        %v369 = vpop.xlane.xlu0 %368
        %370 = vmax.xlane.f32.xlu0 %v367
        %v371 = vpop.xlane.xlu0 %370
        %vm372 = vcmp.eq.f32.partialorder %v366, %v369
        %vm373 = vcmp.eq.f32.partialorder %v367, %v371
        %v374 = vsel %vm372, %v313, 128
        %v375 = vsel %vm373, %v313, 128
        %v376 = vand.u32 %v374, 65535
        %v377 = vshra.s32 %v374, 16
        %v378 = vcvt.s32.f32 %v376
        %v379 = vcvt.s32.f32 %v377
        %380 = vmin.xlane.f32.xlu0 %v379
        %v381 = vpop.xlane.xlu0 %380
        %vm382 = vcmp.eq.f32.partialorder %v379, %v381
        %v383 = vsel %vm382, %v378, inf
        %384 = vmin.xlane.f32.xlu0 %v383
        %v385 = vpop.xlane.xlu0 %384
        %v386 = vcvt.f32.s32 %v385
        %v387 = vcvt.f32.s32 %v381
        %v388 = vshll.u32 %v387, 16
        %v389 = vadd.s32 %v388, %v386
        %v390 = vand.u32 %v375, 65535
        %v391 = vshra.s32 %v375, 16
        %v392 = vcvt.s32.f32 %v390
        %v393 = vcvt.s32.f32 %v391
        %394 = vmin.xlane.f32.xlu0 %v393
        %v395 = vpop.xlane.xlu0 %394
        %vm396 = vcmp.eq.f32.partialorder %v393, %v395
        %v397 = vsel %vm396, %v392, inf
        %398 = vmin.xlane.f32.xlu0 %v397
        %v399 = vpop.xlane.xlu0 %398
        %v400 = vcvt.f32.s32 %v399
        %v401 = vcvt.f32.s32 %v395
        %v402 = vshll.u32 %v401, 16
        %v403 = vadd.s32 %v402, %v400
        %vm404 = vcmp.eq.s32.totalorder %v313, %v389
        %vm405 = vcmp.eq.s32.totalorder %v313, %v403
        %v406 = vsel %vm404, 1, 0
        %v407 = vsel %vm405, 1, 0
        %v408 = vadd.s32 %v364, %v406
        %v409 = vadd.s32 %v365, %v407
        %v410 = vsel %vm321, 1, 0
        %v411 = vsel %vm322, 1, 0
        %vm412 = vcmp.eq.s32.totalorder %v410, 1
        %vm413 = vcmp.eq.s32.totalorder %v411, 1
        %v414 = vsel %vm412, %v408, 0
        %v415 = vsel %vm413, %v409, 0
        %v416 = vadd.s32 %v414, %v415
        %v417 = vrot.slane %v416, 4
        %v418 = vadd.s32 %v416, %v417
        %v419 = vrot.slane %v418, 2
        %v420 = vadd.s32 %v418, %v419
        %v421 = vrot.slane %v420, 1
        %v422 = vadd.s32 %v420, %v421
        %423 = vst [vmem:[%s257] sm:$0x1] %v422
        %v424 = vsub.f32 %v327, %v327
        %v425 = vsub.f32 %v329, %v329
        %v426 = vmul.f32 %v424, 1.442695
        %v427 = vpow.pop %v426
        %v428 = vmul.f32 %v425, 1.442695
        %v429 = vpow.pop %v428
        %v430 = vsub.f32 %v369, %v327
        %v431 = vsub.f32 %v371, %v329
        %v432 = vmul.f32 %v430, 1.442695
        %v433 = vpow.pop %v432
        %v434 = vmul.f32 %v431, 1.442695
        %v435 = vpow.pop %v434
        %v436 = vadd.f32 %v427, %v433
        %v437 = vadd.f32 %v429, %v435
        %v438 = vrcp.pop %v436
        %v439 = vmul.f32 %v436, %v438
        %v440 = vsub.f32 1.0, %v439
        %v441 = vmul.f32 %v438, %v440
        %v442 = vadd.f32 %v438, %v441
        %vm443 = vweird.f32 %v436
        %vm444 = vweird.f32 %v438
        %vm445 = vmor %vm443, %vm444
        %v446 = vsel %vm445, %v438, %v442
        %v447 = vand.u32 2147483647, %v436
        %vm448 = vcmp.eq.f32.partialorder %v447, 8.507059e+37
        %v449 = vand.u32 %v436, 2147483648
        %v450 = vor.u32 1.1754944e-38, %v449
        %v451 = vsel %vm448, %v450, %v446
        %v452 = vmul.f32 1.0, %v451
        %v453 = vrcp.pop %v437
        %v454 = vmul.f32 %v437, %v453
        %v455 = vsub.f32 1.0, %v454
        %v456 = vmul.f32 %v453, %v455
        %v457 = vadd.f32 %v453, %v456
        %vm458 = vweird.f32 %v437
        %vm459 = vweird.f32 %v453
        %vm460 = vmor %vm458, %vm459
        %v461 = vsel %vm460, %v453, %v457
        %v462 = vand.u32 2147483647, %v437
        %vm463 = vcmp.eq.f32.partialorder %v462, 8.507059e+37
        %v464 = vand.u32 %v437, 2147483648
        %v465 = vor.u32 1.1754944e-38, %v464
        %v466 = vsel %vm463, %v465, %v461
        %v467 = vmul.f32 1.0, %v466
        %vm468 = vcmp.eq.s32.totalorder %v313, 0
        %v469 = vmul.f32 %v427, %v452
        %v470 = vmul.f32 %v429, %v467
        %v471 = vsel %vm468, %v469, 0.0
        %v472 = vsel %vm468, %v470, 0.0
        %vm473 = vcmp.eq.s32.totalorder %v313, 2
        %v474 = vcvt.s32.f32 %v347
        %v475 = vcvt.s32.f32 %v361
        %v476 = vsel %vm473, %v474, %v471
        %v477 = vsel %vm473, %v475, %v472
        %vm478 = vcmp.eq.s32.totalorder %v313, 1
        %v479 = vmul.f32 %v433, %v452
        %v480 = vmul.f32 %v435, %v467
        %v481 = vsel %vm478, %v479, %v476
        %v482 = vsel %vm478, %v480, %v477
        %vm483 = vcmp.eq.s32.totalorder %v313, 3
        %v484 = vcvt.s32.f32 %v389
        %v485 = vcvt.s32.f32 %v403
        %v486 = vsel %vm483, %v484, %v481
        %v487 = vsel %vm483, %v485, %v482
        %488 = vst [vmem:[%s251] sm:$0xff] %v486
        %489 = vst [vmem:[%s251 + $0x8] sm:$0xff] %v487
        %s490 = sand.u32 %s81, 1
        %s491 = sand.u32 %s81, 1
        %s492 = smul.addr %s491, 16
        %s493 = scalar_lea.vmem [#allocation7], %s492
        %s494 = sand.u32 %s107, 1
        %s495 = scalar_lea.sflag [#allocation4], %s494
        %s496 = sand.u32 %s107, 1
        %s497 = smul.addr %s496, 16
        %s498 = scalar_lea.vmem [#allocation8], %s497
        %s499 = sand.u32 %s133, 1
        %s500 = scalar_lea.sflag [#allocation10], %s499
        %s501 = sand.u32 %s133, 1
        %s502 = scalar_lea.vmem [#allocation9], %s501
        // Predicated region
        $region37: #{tpu_custom_call.1} parent=27 // pred_check
          %p503 = pneg %p91
        $region38: #{tpu_custom_call.1} parent=27 // pred_check_branch
          %505 = sbr.rel (%p503) target = $region40
        $region39: #{tpu_custom_call.1} parent=27 // pred_region
          %s506 = smul.u32 2, %s26
          %s507 = ssub.s32 3, %s506
          %p508 = scmp.lt.s32.totalorder %s507, 2
          %s509 = scalar_select %p508, %s507, 2
          %s510 = smul.u32 8, %s509
          %p511 = scmp.ne.s32.totalorder 0, %s510
          %s512 = smul.addr %s506, 8
          %s513 = scalar_lea.vmem %s2, %s512
          // Predicated region
          $region41: #{tpu_custom_call.1} parent=39 // pred_check
            %p514 = pneg %p511
          $region42: #{tpu_custom_call.1} parent=39 // pred_check_branch
            %516 = sbr.rel (%p514) target = $region44
          $region43: #{tpu_custom_call.1} parent=39 // pred_region
            // Predicated region
            $region45: #{tpu_custom_call.1} parent=43 // pred_check
              _
            $region46: #{tpu_custom_call.1} parent=43 // pred_check_branch
              %518 = sbr.rel (0) target = $region48
            $region47: #{tpu_custom_call.1} parent=43 // pred_region
              // Predicated region
              $region67: #{tpu_custom_call.1} parent=47 // pred_check
                _
              $region68: #{tpu_custom_call.1} parent=47 // pred_check_branch
                %570 = sbr.rel (0) target = $region70
              $region69: #{tpu_custom_call.1} parent=47 // pred_region
                %s571 = sshrl.u32 %s509, 1
                // While loop
                $region71: #{tpu_custom_call.1} parent=69 // loop_pre_header
                  _
                $region72: #{tpu_custom_call.1} parent=69 // loop_header
                  %s573 = sphi 0, %s575
                  %p574 = scmp.ge.s32.totalorder %s573, %s571
                  %s578 = sphi 0, %s587
                  %s579 = sphi %s493, %s590
                  %s580 = sphi %s513, %s591
                $region73: #{tpu_custom_call.1} parent=69 // loop_header_branch
                  %577 = sbr.rel (%p574) target = $region77
                $region74: #{tpu_custom_call.1} parent=69 // loop_body
                  %v581 = vld [vmem:[%s579] sm:$0xff]
                  %582 = vst [vmem:[%s580] sm:$0xff] %v581
                  %v583 = vld [vmem:[%s579 + $0x8] sm:$0xff]
                  %584 = vst [vmem:[%s580 + $0x8] sm:$0xff] %v583
                  %s585 = sadd.s32 1, %s578
                  %p586 = scmp.ge.s32.totalorder %s585, %s571
                  %s587 = scalar_select %p586, 0, %s585
                  %s588 = smul.u32 %s587, 16
                  %s589 = smul.u32 %s587, 16
                  %s590 = scalar_lea.vmem %s493, %s588 [#allocation7]
                  %s591 = scalar_lea.vmem %s513, %s589
                $region75: #{tpu_custom_call.1} parent=69 // loop_footer
                  %s575 = sadd.s32 %s573, 1
                $region76: #{tpu_custom_call.1} parent=69 // loop_footer_branch
                  %572 = sbr.rel target = $region72
                $region77: #{tpu_custom_call.1} parent=69 // loop_exit
                  _
                %s592 = sshrl.u32 %s509, 1
                %s593 = sand.u32 %s509, 1
                %s594 = smul.u32 %s592, 2
                %s595 = smul.u32 8, %s594
                %s596 = scalar_lea.vmem %s493, %s595 [#allocation7]
                %s597 = smul.u32 8, %s594
                %s598 = scalar_lea.vmem %s513, %s597
                // While loop
                $region78: #{tpu_custom_call.1} parent=69 // loop_pre_header
                  _
                $region79: #{tpu_custom_call.1} parent=69 // loop_header
                  %s600 = sphi 0, %s602
                  %p601 = scmp.ge.s32.totalorder %s600, %s593
                  %s605 = sphi 0, %s612
                  %s606 = sphi %s596, %s615
                  %s607 = sphi %s598, %s616
                $region80: #{tpu_custom_call.1} parent=69 // loop_header_branch
                  %604 = sbr.rel (%p601) target = $region84
                $region81: #{tpu_custom_call.1} parent=69 // loop_body
                  %v608 = vld [vmem:[%s606] sm:$0xff]
                  %609 = vst [vmem:[%s607] sm:$0xff] %v608
                  %s610 = sadd.s32 1, %s605
                  %p611 = scmp.ge.s32.totalorder %s610, %s593
                  %s612 = scalar_select %p611, 0, %s610
                  %s613 = smul.u32 %s612, 8
                  %s614 = smul.u32 %s612, 8
                  %s615 = scalar_lea.vmem %s596, %s613 [#allocation7]
                  %s616 = scalar_lea.vmem %s598, %s614
                $region82: #{tpu_custom_call.1} parent=69 // loop_footer
                  %s602 = sadd.s32 %s600, 1
                $region83: #{tpu_custom_call.1} parent=69 // loop_footer_branch
                  %599 = sbr.rel target = $region79
                $region84: #{tpu_custom_call.1} parent=69 // loop_exit
                  _
              $region70: #{tpu_custom_call.1} parent=47 // pred_fallthru
                _
              // Predicated region
              $region85: #{tpu_custom_call.1} parent=47 // pred_check
                _
              $region86: #{tpu_custom_call.1} parent=47 // pred_check_branch
                %618 = sbr.rel target = $region88
              $region87: #{tpu_custom_call.1} parent=47 // pred_region
                _
              $region88: #{tpu_custom_call.1} parent=47 // pred_fallthru
                _
            $region48: #{tpu_custom_call.1} parent=43 // pred_fallthru
              _
            // Predicated region
            $region49: #{tpu_custom_call.1} parent=43 // pred_check
              _
            $region50: #{tpu_custom_call.1} parent=43 // pred_check_branch
              %520 = sbr.rel target = $region52
            $region51: #{tpu_custom_call.1} parent=43 // pred_region
              %s522 = ssub.s32 256, 1
              %s523 = sshrl.u32 %s509, 1
              // While loop
              $region53: #{tpu_custom_call.1} parent=51 // loop_pre_header
                _
              $region54: #{tpu_custom_call.1} parent=51 // loop_header
                %s525 = sphi 0, %s527
                %p526 = scmp.ge.s32.totalorder %s525, %s523
                %s530 = sphi 0, %s539
                %s531 = sphi %s493, %s542
                %s532 = sphi %s513, %s543
              $region55: #{tpu_custom_call.1} parent=51 // loop_header_branch
                %529 = sbr.rel (%p526) target = $region59
              $region56: #{tpu_custom_call.1} parent=51 // loop_body
                %v533 = vld [vmem:[%s531] sm:%s522]
                %534 = vst [vmem:[%s532] sm:%s522] %v533
                %v535 = vld [vmem:[%s531 + $0x8] sm:%s522]
                %536 = vst [vmem:[%s532 + $0x8] sm:%s522] %v535
                %s537 = sadd.s32 1, %s530
                %p538 = scmp.ge.s32.totalorder %s537, %s523
                %s539 = scalar_select %p538, 0, %s537
                %s540 = smul.u32 %s539, 16
                %s541 = smul.u32 %s539, 16
                %s542 = scalar_lea.vmem %s493, %s540 [#allocation7]
                %s543 = scalar_lea.vmem %s513, %s541
              $region57: #{tpu_custom_call.1} parent=51 // loop_footer
                %s527 = sadd.s32 %s525, 1
              $region58: #{tpu_custom_call.1} parent=51 // loop_footer_branch
                %524 = sbr.rel target = $region54
              $region59: #{tpu_custom_call.1} parent=51 // loop_exit
                _
              %s544 = sshrl.u32 %s509, 1
              %s545 = sand.u32 %s509, 1
              %s546 = smul.u32 %s544, 2
              %s547 = smul.u32 8, %s546
              %s548 = scalar_lea.vmem %s493, %s547 [#allocation7]
              %s549 = smul.u32 8, %s546
              %s550 = scalar_lea.vmem %s513, %s549
              // While loop
              $region60: #{tpu_custom_call.1} parent=51 // loop_pre_header
                _
              $region61: #{tpu_custom_call.1} parent=51 // loop_header
                %s552 = sphi 0, %s554
                %p553 = scmp.ge.s32.totalorder %s552, %s545
                %s557 = sphi 0, %s564
                %s558 = sphi %s548, %s567
                %s559 = sphi %s550, %s568
              $region62: #{tpu_custom_call.1} parent=51 // loop_header_branch
                %556 = sbr.rel (%p553) target = $region66
              $region63: #{tpu_custom_call.1} parent=51 // loop_body
                %v560 = vld [vmem:[%s558] sm:%s522]
                %561 = vst [vmem:[%s559] sm:%s522] %v560
                %s562 = sadd.s32 1, %s557
                %p563 = scmp.ge.s32.totalorder %s562, %s545
                %s564 = scalar_select %p563, 0, %s562
                %s565 = smul.u32 %s564, 8
                %s566 = smul.u32 %s564, 8
                %s567 = scalar_lea.vmem %s548, %s565 [#allocation7]
                %s568 = scalar_lea.vmem %s550, %s566
              $region64: #{tpu_custom_call.1} parent=51 // loop_footer
                %s554 = sadd.s32 %s552, 1
              $region65: #{tpu_custom_call.1} parent=51 // loop_footer_branch
                %551 = sbr.rel target = $region61
              $region66: #{tpu_custom_call.1} parent=51 // loop_exit
                _
            $region52: #{tpu_custom_call.1} parent=43 // pred_fallthru
              _
          $region44: #{tpu_custom_call.1} parent=39 // pred_fallthru
            _
          %619 = vnop
        $region40: #{tpu_custom_call.1} parent=27 // pred_fallthru
          _
        // Predicated region
        $region89: #{tpu_custom_call.1} parent=27 // pred_check
          %p620 = pneg %p117
        $region90: #{tpu_custom_call.1} parent=27 // pred_check_branch
          %622 = sbr.rel (%p620) target = $region92
        $region91: #{tpu_custom_call.1} parent=27 // pred_region
          %s623 = smul.u32 2, %s26
          %s624 = ssub.s32 3, %s623
          %p625 = scmp.lt.s32.totalorder %s624, 2
          %s626 = scalar_select %p625, %s624, 2
          %s627 = smul.u32 8, %s626
          %s628 = ssub.s32 16, %s627
          %s629 = sshll.u32 %s628, 4
          %630 = vsyncadd %s495, %s629
          %p631 = scmp.ne.s32.totalorder 0, %s627
          %s632 = smul.addr %s623, 8
          %s633 = scalar_lea.hbm %s3, %s632
          %s634 = smul.u32 8, %s626
          %s635 = sshll.u32 %s498, 4
          %s636 = int_to_ptr.vmem [resolvable:$true] %s635
          %s637 = sshll.u32 %s633, 4
          %s638 = int_to_ptr.hbm [resolvable:$true] %s637
          %s639 = sshll.u32 %s634, 4
          %643 = dma.vmem_to_hbm [thread:$0]  (%p631), %s636, %s639, %s638, %s495, 128, 128, 8
        $region92: #{tpu_custom_call.1} parent=27 // pred_fallthru
          _
        // Predicated region
        $region93: #{tpu_custom_call.1} parent=27 // pred_check
          %p644 = pneg %p143
        $region94: #{tpu_custom_call.1} parent=27 // pred_check_branch
          %646 = sbr.rel (%p644) target = $region96
        $region95: #{tpu_custom_call.1} parent=27 // pred_region
          %648 = vsyncadd %s500, 0
          %s649 = scalar_lea.hbm %s4, %s26
          %s651 = sshll.u32 %s502, 4
          %s652 = int_to_ptr.vmem [resolvable:$true] %s651
          %s653 = sshll.u32 %s649, 4
          %s654 = int_to_ptr.hbm [resolvable:$true] %s653
          %656 = dma.vmem_to_hbm [thread:$0]  %s652, 16, %s654, %s500
        $region96: #{tpu_custom_call.1} parent=27 // pred_fallthru
          _
      $region28: #{tpu_custom_call.1} parent=5 // pred_fallthru
        _
      %p657 = scmp.le.s32.totalorder 2, %s21
      // Predicated region
      $region97: #{tpu_custom_call.1} parent=5 // pred_check
        %p658 = pneg %p657
      $region98: #{tpu_custom_call.1} parent=5 // pred_check_branch
        %660 = sbr.rel (%p658) target = $region100
      $region99: #{tpu_custom_call.1} parent=5 // pred_region
        %s661 = ssub.s32 %s21, 2
        // Predicated region
        $region101: #{tpu_custom_call.1} parent=99 // pred_check
          %p662 = pneg %p97
        $region102: #{tpu_custom_call.1} parent=99 // pred_check_branch
          %664 = sbr.rel (%p662) target = $region104
        $region103: #{tpu_custom_call.1} parent=99 // pred_region
          %s665 = sand.u32 %s82, 1
          %s666 = sand.u32 %s82, 1
          %s667 = smul.addr %s666, 16
          %s668 = scalar_lea.vmem [#allocation7], %s667
        $region104: #{tpu_custom_call.1} parent=99 // pred_fallthru
          _
        // Predicated region
        $region105: #{tpu_custom_call.1} parent=99 // pred_check
          %p669 = pneg %p123
        $region106: #{tpu_custom_call.1} parent=99 // pred_check_branch
          %671 = sbr.rel (%p669) target = $region108
        $region107: #{tpu_custom_call.1} parent=99 // pred_region
          %s672 = sand.u32 %s108, 1
          %s673 = scalar_lea.sflag [#allocation4], %s672
          %s674 = sand.u32 %s108, 1
          %s675 = smul.addr %s674, 16
          %s676 = scalar_lea.vmem [#allocation8], %s675
          %678 = dma.done %s673, 256
        $region108: #{tpu_custom_call.1} parent=99 // pred_fallthru
          _
        // Predicated region
        $region109: #{tpu_custom_call.1} parent=99 // pred_check
          %p679 = pneg %p149
        $region110: #{tpu_custom_call.1} parent=99 // pred_check_branch
          %681 = sbr.rel (%p679) target = $region112
        $region111: #{tpu_custom_call.1} parent=99 // pred_region
          %s682 = sand.u32 %s134, 1
          %s683 = scalar_lea.sflag [#allocation10], %s682
          %s684 = sand.u32 %s134, 1
          %s685 = scalar_lea.vmem [#allocation9], %s684
          %687 = dma.done %s683, 16
        $region112: #{tpu_custom_call.1} parent=99 // pred_fallthru
          _
      $region100: #{tpu_custom_call.1} parent=5 // pred_fallthru
        _
    $region6: #{tpu_custom_call.1} parent=1 // loop_footer
      %s25 = sadd.s32 1, %s21
    $region7: #{tpu_custom_call.1} parent=1 // loop_footer_branch
      %20 = sbr.rel target = $region3
    $region8: #{tpu_custom_call.1} parent=1 // loop_exit
      _
    %688 = vsyncpa [#allocation3], 1
    %s689 = scalar_lea.sflag [#allocation3], 1
    %690 = vsyncpa %s689, 1
    %691 = vsyncpa [#allocation6], 1
    %692 = vsyncpa [#allocation4], 1
    %s693 = scalar_lea.sflag [#allocation4], 1
    %694 = vsyncpa %s693, 1
    %695 = vsyncpa [#allocation10], 1
    %s696 = scalar_lea.sflag [#allocation10], 1
    %697 = vsyncpa %s696, 1

</llo_original>
